<compile_context>
chip_gen: v7x
topology: tpu7x:2x2x1
jax: 0.10.0
libtpu: 0.0.40
codegen_flags: <defaults>
</compile_context>

<pallas_src>
import functools

import jax
import jax.numpy as jnp
import numpy as np
from jax.experimental import pallas as pl
from jax.experimental.pallas import tpu as pltpu

# ---- model hyperparameters (d_model / tgt_len fixed by the module) ----
D_MODEL = 64
PEP_A_MAX_LEN = 11
PEP_B_MAX_LEN = 11
TGT_LEN = PEP_A_MAX_LEN + PEP_B_MAX_LEN   # 22 (valid sequence length)
T_PAD = 24                                 # padded to a multiple of 8 sublanes
N_LAYERS = 1
N_HEADS = 2
D_K = 32          # d_k = d_v ; N_HEADS * D_K == D_MODEL
D_FF = 128
LN_EPS = 1e-5


def _layer_norm(y):
    """nn.LayerNorm(d_model) with default weight=1, bias=0 (row-wise over last axis)."""
    mu = jnp.mean(y, axis=-1, keepdims=True)
    var = jnp.mean((y - mu) ** 2, axis=-1, keepdims=True)
    return (y - mu) * jax.lax.rsqrt(var + LN_EPS)


def decoder_stack_kernel(x_ref, wq_ref, wk_ref, wv_ref, wfc_ref, w1_ref, w2_ref,
                         o_ref, attn_ref):
    """Grid = (batch_chunks, N_LAYERS); one batch chunk x one layer per step.

    x_ref   : (Bc*T_PAD, D)   flattened activations, PE already added, seq padded to T_PAD
    wq/wk/wv: (1, D, D)        per-layer projection weights (1/sqrt(dk) folded into W_Q)
    wfc     : (1, D, D)        output projection
    w1      : (1, D, DFF), w2: (1, DFF, D)
    o_ref   : (Bc*T_PAD, D)    layer-resident activations (same block across the layer axis)
    attn_ref: (1, Bc, H, T_PAD, T_PAD) self-attention probabilities for this layer/chunk
    """
    _, Bc, H, T, _ = attn_ref.shape
    BT, D = x_ref.shape
    DK = D // H
    layer = pl.program_id(1)

    # Layer 0: seed the VMEM-resident activation block from the input.
    @pl.when(layer == 0)
    def _init():
        o_ref[...] = x_ref[...]

    xf = o_ref[...]                                                    # (BT, D)

    wq = wq_ref[0]
    wk = wk_ref[0]
    wv = wv_ref[0]
    wfc = wfc_ref[0]
    w1 = w1_ref[0]
    w2 = w2_ref[0]

    # --- full-width Q/K/V projections: 3 x (BT,64)x(64,64) MXU pushes ---
    q = jnp.dot(xf, wq, preferred_element_type=jnp.float32)           # (BT, D)
    k = jnp.dot(xf, wk, preferred_element_type=jnp.float32)
    v = jnp.dot(xf, wv, preferred_element_type=jnp.float32)

    # Padded key columns (>= TGT_LEN) get -1e9 so softmax weight there is exactly 0.
    # (The module's dec_self_attn_pad_mask is all-False, so no other masking.)
    col = jax.lax.broadcasted_iota(jnp.int32, (T, T), 1)
    key_bias = jnp.where(col < TGT_LEN, 0.0, -1e9).astype(jnp.float32)  # (T, T)

    attn_out = None
    for h in range(H):                                                 # static, H=2
        lo = h * DK
        qh = q[:, lo:lo + DK].reshape(Bc, T, DK)                       # sublane-aligned split
        kh = k[:, lo:lo + DK].reshape(Bc, T, DK)
        vh = v[:, lo:lo + DK].reshape(Bc, T, DK)

        # scores = Q @ K^T without a transpose: batched contraction of last dims.
        scores = jax.lax.dot_general(
            qh, kh, (((2,), (2,)), ((0,), (0,))),
            preferred_element_type=jnp.float32)                        # (Bc, T, T)
        scores = scores + key_bias[None]

        m = jnp.max(scores, axis=-1, keepdims=True)
        e = jnp.exp(scores - m)
        attn = e / jnp.sum(e, axis=-1, keepdims=True)                  # exact softmax
        for b in range(Bc):                                            # static, tiny
            attn_ref[0, b, h, :, :] = attn[b]

        ctx = jax.lax.dot_general(
            attn, vh, (((2,), (1,)), ((0,), (0,))),
            preferred_element_type=jnp.float32)                        # (Bc, T, DK)
        proj = jnp.dot(ctx.reshape(BT, DK), wfc[lo:lo + DK, :],
                       preferred_element_type=jnp.float32)             # (BT, D)
        attn_out = proj if attn_out is None else attn_out + proj

    h1 = _layer_norm(attn_out + xf)                                    # residual + LN

    # --- position-wise feed-forward ---
    ff = jnp.dot(jax.nn.relu(
        jnp.dot(h1, w1, preferred_element_type=jnp.float32)),
        w2, preferred_element_type=jnp.float32)
    o_ref[...] = _layer_norm(ff + h1).astype(o_ref.dtype)              # residual + LN


def make_positional_encoding(max_len, d_model):
    """Matches PositionalEncoding.__init__ (sin on even, cos on odd columns)."""
    position = np.arange(max_len, dtype=np.float32)[:, None]
    div_term = np.exp(np.arange(0, d_model, 2, dtype=np.float32)
                      * (-np.log(10000.0) / d_model))
    pe = np.zeros((max_len, d_model), dtype=np.float32)
    pe[:, 0::2] = np.sin(position * div_term)
    pe[:, 1::2] = np.cos(position * div_term)
    return jnp.asarray(pe)


@functools.partial(jax.jit, static_argnames=("batch_chunks",))
def decoder_forward(dec_inputs, pe, stacked_params, batch_chunks=1):
    """Full Decoder.forward: returns (dec_outputs, [attn_layer_0, ...]).

    batch_chunks: grid steps the batch is split into along the "parallel" axis.
    Default 1 (whole batch per step) — best on single-TC chips (v5e/v6e).
    On v7x, batch_chunks=2 shards the two chunks across the two TensorCores;
    alignment is guaranteed because T is padded to 24 (Bc*T_PAD % 8 == 0).
    """
    B, T, D = dec_inputs.shape
    H, DK, DFF = N_HEADS, D_K, D_FF
    assert T == TGT_LEN and D == D_MODEL
    assert B % batch_chunks == 0
    Bc = B // batch_chunks
    BTc = Bc * T_PAD

    # --- wrapper-side layout plumbing: PE add hoisted, seq padded 22 -> 24 ---
    x = dec_inputs + pe[None, :T, :]
    x = jnp.pad(x, ((0, 0), (0, T_PAD - T), (0, 0)))
    x_flat = x.reshape(B * T_PAD, D)

    wq_s = stacked_params["wq"]
    wk_s = stacked_params["wk"]
    wv_s = stacked_params["wv"]
    wfc_s = stacked_params["wfc"]
    w1_s = stacked_params["w1"]
    w2_s = stacked_params["w2"]

    out_flat, attn_all = pl.pallas_call(
        decoder_stack_kernel,
        out_shape=(
            jax.ShapeDtypeStruct((B * T_PAD, D), jnp.float32),
            jax.ShapeDtypeStruct((N_LAYERS, B, H, T_PAD, T_PAD), jnp.float32),
        ),
        grid_spec=pltpu.PrefetchScalarGridSpec(
            num_scalar_prefetch=0,
            grid=(batch_chunks, N_LAYERS),
            in_specs=[
                pl.BlockSpec((BTc, D), lambda i, l: (i, 0)),        # activations (flat)
                pl.BlockSpec((1, D, H * DK), lambda i, l: (l, 0, 0)),   # W_Q (scale folded)
                pl.BlockSpec((1, D, H * DK), lambda i, l: (l, 0, 0)),   # W_K
                pl.BlockSpec((1, D, H * DK), lambda i, l: (l, 0, 0)),   # W_V
                pl.BlockSpec((1, H * DK, D), lambda i, l: (l, 0, 0)),   # fc
                pl.BlockSpec((1, D, DFF), lambda i, l: (l, 0, 0)),      # ffn W1
                pl.BlockSpec((1, DFF, D), lambda i, l: (l, 0, 0)),      # ffn W2
            ],
            out_specs=[
                # Same block index for every layer step -> activation stays VMEM-resident.
                pl.BlockSpec((BTc, D), lambda i, l: (i, 0)),
                pl.BlockSpec((1, Bc, H, T_PAD, T_PAD),
                             lambda i, l: (l, i, 0, 0, 0)),
            ],
        ),
        compiler_params=pltpu.CompilerParams(
            dimension_semantics=("parallel", "arbitrary")),
    )(x_flat, wq_s, wk_s, wv_s, wfc_s, w1_s, w2_s)

    dec_outputs = out_flat.reshape(B, T_PAD, D)[:, :T, :]
    dec_self_attns = [attn_all[l, :, :, :T, :T] for l in range(N_LAYERS)]
    return dec_outputs, dec_self_attns


def init_params(key):
    """Deterministic synthetic weights (PyTorch Linear(in,out,bias=False) -> (in,out))."""
    params = []
    for _ in range(N_LAYERS):
        key, *ks = jax.random.split(key, 7)
        params.append({
            "wq": jax.random.normal(ks[0], (D_MODEL, N_HEADS * D_K), jnp.float32) * 0.05,
            "wk": jax.random.normal(ks[1], (D_MODEL, N_HEADS * D_K), jnp.float32) * 0.05,
            "wv": jax.random.normal(ks[2], (D_MODEL, N_HEADS * D_K), jnp.float32) * 0.05,
            "wfc": jax.random.normal(ks[3], (N_HEADS * D_K, D_MODEL), jnp.float32) * 0.05,
            "w1": jax.random.normal(ks[4], (D_MODEL, D_FF), jnp.float32) * 0.05,
            "w2": jax.random.normal(ks[5], (D_FF, D_MODEL), jnp.float32) * 0.05,
        })
    return params


def fold_qk_scale(params):
    """One-time host transform: fold 1/sqrt(d_k) into W_Q (scores scale)."""
    scale = np.float32(1.0 / np.sqrt(D_K))
    return [{**p, "wq": p["wq"] * scale} for p in params]


def stack_params(params):
    """Stack per-layer dicts into (N_LAYERS, ...) arrays for the fused-stack kernel."""
    return {k: jnp.stack([p[k] for p in params])
            for k in ("wq", "wk", "wv", "wfc", "w1", "w2")}


def decoder_reference(dec_inputs, pe, params):
    """Pure-JAX reference with identical math (scale already folded into W_Q)."""
    B, T, D = dec_inputs.shape
    x = dec_inputs + pe[None, :T, :]
    attns = []
    for p in params:
        q = x @ p["wq"]
        k = x @ p["wk"]
        v = x @ p["wv"]
        qh = q.reshape(B, T, N_HEADS, D_K).transpose(0, 2, 1, 3)
        kh = k.reshape(B, T, N_HEADS, D_K).transpose(0, 2, 1, 3)
        vh = v.reshape(B, T, N_HEADS, D_K).transpose(0, 2, 1, 3)
        scores = jnp.einsum("bhqd,bhkd->bhqk", qh, kh)
        attn = jax.nn.softmax(scores, axis=-1)
        attns.append(attn)
        ctx = jnp.einsum("bhqk,bhkd->bhqd", attn, vh)
        ctx = ctx.transpose(0, 2, 1, 3).reshape(B, T, N_HEADS * D_K)
        h1 = _layer_norm(ctx @ p["wfc"] + x)
        ff = jax.nn.relu(h1 @ p["w1"]) @ p["w2"]
        x = _layer_norm(ff + h1)
    return x, attns


if __name__ == "__main__":
    key = jax.random.PRNGKey(0)
    k_in, k_par = jax.random.split(key)

    B = 2
    dec_inputs = jax.random.normal(k_in, (B, TGT_LEN, D_MODEL), jnp.float32)
    pe = make_positional_encoding(TGT_LEN, D_MODEL)
    params = fold_qk_scale(init_params(k_par))
    stacked = stack_params(params)

    dec_outputs, dec_self_attns = decoder_forward(dec_inputs, pe, stacked)
    jax.block_until_ready(dec_outputs)
    jax.block_until_ready(dec_self_attns)

    assert dec_outputs.shape == (B, TGT_LEN, D_MODEL)
    assert len(dec_self_attns) == N_LAYERS
    assert dec_self_attns[0].shape == (B, N_HEADS, TGT_LEN, TGT_LEN)

    # softmax rows must sum to ~1 (exact divide now; padded keys contribute exactly 0)
    row_sums = jnp.sum(dec_self_attns[0], axis=-1)
    assert bool(jnp.allclose(row_sums, 1.0, atol=1e-4)), "attention rows not normalized"

    # compare against the pure-JAX reference
    ref_out, ref_attns = decoder_reference(dec_inputs, pe, params)
    assert bool(jnp.allclose(dec_outputs, ref_out, atol=2e-3, rtol=2e-3)), \
        "dec_outputs mismatch vs reference"
    assert bool(jnp.allclose(dec_self_attns[0], ref_attns[0], atol=1e-3, rtol=1e-3)), \
        "attention probabilities mismatch vs reference"

    # megacore-shaped path (batch_chunks=2): correct on all chips, parallel across TCs on v7x
    out2, attns2 = decoder_forward(dec_inputs, pe, stacked, batch_chunks=2)
    jax.block_until_ready(out2)
    assert bool(jnp.allclose(out2, dec_outputs, atol=1e-5, rtol=1e-5)), \
        "batch_chunks=2 path mismatch"
    assert bool(jnp.allclose(attns2[0], dec_self_attns[0], atol=1e-5, rtol=1e-5)), \
        "batch_chunks=2 attention mismatch"

    print("KERNEL_OK")
</pallas_src>

<mosaic_0001>
module attributes {stable_mosaic.version = 11 : i64} {
  func.func @decoder_stack_kernel(%arg0: i32, %arg1: i32, %arg2: memref<48x64xf32, #tpu.memory_space<vmem>>, %arg3: memref<1x64x64xf32, #tpu.memory_space<vmem>>, %arg4: memref<1x64x64xf32, #tpu.memory_space<vmem>>, %arg5: memref<1x64x64xf32, #tpu.memory_space<vmem>>, %arg6: memref<1x64x64xf32, #tpu.memory_space<vmem>>, %arg7: memref<1x64x128xf32, #tpu.memory_space<vmem>>, %arg8: memref<1x128x64xf32, #tpu.memory_space<vmem>>, %arg9: memref<48x64xf32, #tpu.memory_space<vmem>>, %arg10: memref<1x2x2x24x24xf32, #tpu.memory_space<vmem>>) attributes {dimension_semantics = [#tpu.dimension_semantics<parallel>, #tpu.dimension_semantics<arbitrary>], iteration_bounds = array<i64: 1, 1>, scalar_prefetch = 0 : i64, scratch_operands = 0 : i64, tpu.core_type = #tpu.core_type<tc>, window_params = [{transform_indices = @transform_0, window_bounds = array<i64: 48, 64>}, {transform_indices = @transform_1, window_bounds = array<i64: 1, 64, 64>}, {transform_indices = @transform_2, window_bounds = array<i64: 1, 64, 64>}, {transform_indices = @transform_3, window_bounds = array<i64: 1, 64, 64>}, {transform_indices = @transform_4, window_bounds = array<i64: 1, 64, 64>}, {transform_indices = @transform_5, window_bounds = array<i64: 1, 64, 128>}, {transform_indices = @transform_6, window_bounds = array<i64: 1, 128, 64>}, {transform_indices = @transform_7, window_bounds = array<i64: 48, 64>}, {transform_indices = @transform_8, window_bounds = array<i64: 1, 2, 2, 24, 24>}]} {
    %c0_i32 = arith.constant 0 : i32
    %0 = arith.cmpi eq, %arg1, %c0_i32 : i32
    %1 = arith.extui %0 : i1 to i32
    %c0_i32_0 = arith.constant 0 : i32
    %2 = arith.cmpi ne, %1, %c0_i32_0 : i32
    scf.if %2 {
      %c0_68 = arith.constant 0 : index
      %c0_69 = arith.constant 0 : index
      %135 = vector.load %arg2[%c0_68, %c0_69] : memref<48x64xf32, #tpu.memory_space<vmem>>, vector<48x64xf32>
      %c0_70 = arith.constant 0 : index
      %c0_71 = arith.constant 0 : index
      %136 = vector.load %arg9[%c0_70, %c0_71] : memref<48x64xf32, #tpu.memory_space<vmem>>, vector<48x64xf32>
      tpu.vector_store %arg9[%c0_70, %c0_71], %135 {strides = array<i32>} : memref<48x64xf32, #tpu.memory_space<vmem>>, vector<48x64xf32>,
    } else {
    }
    %c0 = arith.constant 0 : index
    %c0_1 = arith.constant 0 : index
    %3 = vector.load %arg9[%c0, %c0_1] : memref<48x64xf32, #tpu.memory_space<vmem>>, vector<48x64xf32>
    %c0_2 = arith.constant 0 : index
    %c0_3 = arith.constant 0 : index
    %c0_4 = arith.constant 0 : index
    %4 = vector.load %arg3[%c0_2, %c0_3, %c0_4] : memref<1x64x64xf32, #tpu.memory_space<vmem>>, vector<1x64x64xf32>
    %5 = vector.shape_cast %4 : vector<1x64x64xf32> to vector<64x64xf32>
    %c0_5 = arith.constant 0 : index
    %c0_6 = arith.constant 0 : index
    %c0_7 = arith.constant 0 : index
    %6 = vector.load %arg4[%c0_5, %c0_6, %c0_7] : memref<1x64x64xf32, #tpu.memory_space<vmem>>, vector<1x64x64xf32>
    %7 = vector.shape_cast %6 : vector<1x64x64xf32> to vector<64x64xf32>
    %c0_8 = arith.constant 0 : index
    %c0_9 = arith.constant 0 : index
    %c0_10 = arith.constant 0 : index
    %8 = vector.load %arg5[%c0_8, %c0_9, %c0_10] : memref<1x64x64xf32, #tpu.memory_space<vmem>>, vector<1x64x64xf32>
    %9 = vector.shape_cast %8 : vector<1x64x64xf32> to vector<64x64xf32>
    %c0_11 = arith.constant 0 : index
    %c0_12 = arith.constant 0 : index
    %c0_13 = arith.constant 0 : index
    %10 = vector.load %arg6[%c0_11, %c0_12, %c0_13] : memref<1x64x64xf32, #tpu.memory_space<vmem>>, vector<1x64x64xf32>
    %11 = vector.shape_cast %10 : vector<1x64x64xf32> to vector<64x64xf32>
    %c0_14 = arith.constant 0 : index
    %c0_15 = arith.constant 0 : index
    %c0_16 = arith.constant 0 : index
    %12 = vector.load %arg7[%c0_14, %c0_15, %c0_16] : memref<1x64x128xf32, #tpu.memory_space<vmem>>, vector<1x64x128xf32>
    %13 = vector.shape_cast %12 : vector<1x64x128xf32> to vector<64x128xf32>
    %c0_17 = arith.constant 0 : index
    %c0_18 = arith.constant 0 : index
    %c0_19 = arith.constant 0 : index
    %14 = vector.load %arg8[%c0_17, %c0_18, %c0_19] : memref<1x128x64xf32, #tpu.memory_space<vmem>>, vector<1x128x64xf32>
    %15 = vector.shape_cast %14 : vector<1x128x64xf32> to vector<128x64xf32>
    %cst = arith.constant dense<0.000000e+00> : vector<48x64xf32>
    %16 = tpu.matmul %3, %5, %cst {dimension_numbers = #tpu.dot_dimension_numbers<[1], [0], [0], [1], [0, 0, 1, 1], [], []>} : vector<48x64xf32>, vector<64x64xf32>, vector<48x64xf32> -> vector<48x64xf32>
    %cst_20 = arith.constant dense<0.000000e+00> : vector<48x64xf32>
    %17 = tpu.matmul %3, %7, %cst_20 {dimension_numbers = #tpu.dot_dimension_numbers<[1], [0], [0], [1], [0, 0, 1, 1], [], []>} : vector<48x64xf32>, vector<64x64xf32>, vector<48x64xf32> -> vector<48x64xf32>
    %cst_21 = arith.constant dense<0.000000e+00> : vector<48x64xf32>
    %18 = tpu.matmul %3, %9, %cst_21 {dimension_numbers = #tpu.dot_dimension_numbers<[1], [0], [0], [1], [0, 0, 1, 1], [], []>} : vector<48x64xf32>, vector<64x64xf32>, vector<48x64xf32> -> vector<48x64xf32>
    %19 = tpu.iota {dimensions = array<i32: 1>} : vector<24x24xi32>
    %c22_i32 = arith.constant 22 : i32
    %20 = vector.broadcast %c22_i32 : i32 to vector<24x24xi32>
    %21 = arith.cmpi slt, %19, %20 : vector<24x24xi32>
    %cst_22 = arith.constant 0.000000e+00 : f32
    %cst_23 = arith.constant -1.000000e+09 : f32
    %22 = vector.broadcast %cst_22 : f32 to vector<24x24xf32>
    %23 = vector.broadcast %cst_23 : f32 to vector<24x24xf32>
    %24 = arith.select %21, %22, %23 : vector<24x24xi1>, vector<24x24xf32>
    %25 = vector.extract_strided_slice %16 {offsets = [0, 0], sizes = [48, 32], strides = [1, 1]} : vector<48x64xf32> to vector<48x32xf32>
    %26 = vector.shape_cast %25 : vector<48x32xf32> to vector<2x24x32xf32>
    %27 = vector.extract_strided_slice %17 {offsets = [0, 0], sizes = [48, 32], strides = [1, 1]} : vector<48x64xf32> to vector<48x32xf32>
    %28 = vector.shape_cast %27 : vector<48x32xf32> to vector<2x24x32xf32>
    %29 = vector.extract_strided_slice %18 {offsets = [0, 0], sizes = [48, 32], strides = [1, 1]} : vector<48x64xf32> to vector<48x32xf32>
    %30 = vector.shape_cast %29 : vector<48x32xf32> to vector<2x24x32xf32>
    %cst_24 = arith.constant dense<0.000000e+00> : vector<2x24x24xf32>
    %31 = tpu.matmul %26, %28, %cst_24 {dimension_numbers = #tpu.dot_dimension_numbers<[2], [2], [1], [1], [0, 0, 0, 1, 1, 1], [0], [0]>} : vector<2x24x32xf32>, vector<2x24x32xf32>, vector<2x24x24xf32> -> vector<2x24x24xf32>
    %32 = vector.shape_cast %24 : vector<24x24xf32> to vector<1x24x24xf32>
    %33 = vector.broadcast %32 : vector<1x24x24xf32> to vector<2x24x24xf32>
    %34 = arith.addf %31, %33 : vector<2x24x24xf32>
    %cst_25 = arith.constant dense<0xFF800000> : vector<2x24xf32>
    %35 = vector.multi_reduction <maximumf>, %34, %cst_25 [2] : vector<2x24x24xf32> to vector<2x24xf32>
    %36 = vector.shape_cast %35 : vector<2x24xf32> to vector<2x24x1xf32>
    %37 = vector.broadcast %36 : vector<2x24x1xf32> to vector<2x24x24xf32>
    %38 = arith.subf %34, %37 : vector<2x24x24xf32>
    %39 = math.exp %38 : vector<2x24x24xf32>
    %cst_26 = arith.constant dense<0.000000e+00> : vector<2x24xf32>
    %40 = vector.multi_reduction <add>, %39, %cst_26 [2] : vector<2x24x24xf32> to vector<2x24xf32>
    %41 = vector.shape_cast %40 : vector<2x24xf32> to vector<2x24x1xf32>
    %42 = vector.broadcast %41 : vector<2x24x1xf32> to vector<2x24x24xf32>
    %43 = arith.divf %39, %42 : vector<2x24x24xf32>
    %44 = vector.extract_strided_slice %43 {offsets = [0, 0, 0], sizes = [1, 24, 24], strides = [1, 1, 1]} : vector<2x24x24xf32> to vector<1x24x24xf32>
    %45 = vector.shape_cast %44 : vector<1x24x24xf32> to vector<24x24xf32>
    %c0_27 = arith.constant 0 : index
    %c0_28 = arith.constant 0 : index
    %c0_29 = arith.constant 0 : index
    %c0_30 = arith.constant 0 : index
    %c0_31 = arith.constant 0 : index
    %46 = vector.load %arg10[%c0_27, %c0_28, %c0_29, %c0_30, %c0_31] : memref<1x2x2x24x24xf32, #tpu.memory_space<vmem>>, vector<1x1x1x24x24xf32>
    %47 = vector.shape_cast %46 : vector<1x1x1x24x24xf32> to vector<24x24xf32>
    %48 = vector.shape_cast %45 : vector<24x24xf32> to vector<1x1x1x24x24xf32>
    tpu.vector_store %arg10[%c0_27, %c0_28, %c0_29, %c0_30, %c0_31], %48 {strides = array<i32>} : memref<1x2x2x24x24xf32, #tpu.memory_space<vmem>>, vector<1x1x1x24x24xf32>,
    %49 = vector.extract_strided_slice %43 {offsets = [1, 0, 0], sizes = [1, 24, 24], strides = [1, 1, 1]} : vector<2x24x24xf32> to vector<1x24x24xf32>
    %50 = vector.shape_cast %49 : vector<1x24x24xf32> to vector<24x24xf32>
    %c0_32 = arith.constant 0 : index
    %c1 = arith.constant 1 : index
    %c0_33 = arith.constant 0 : index
    %c0_34 = arith.constant 0 : index
    %c0_35 = arith.constant 0 : index
    %51 = vector.load %arg10[%c0_32, %c1, %c0_33, %c0_34, %c0_35] : memref<1x2x2x24x24xf32, #tpu.memory_space<vmem>>, vector<1x1x1x24x24xf32>
    %52 = vector.shape_cast %51 : vector<1x1x1x24x24xf32> to vector<24x24xf32>
    %53 = vector.shape_cast %50 : vector<24x24xf32> to vector<1x1x1x24x24xf32>
    tpu.vector_store %arg10[%c0_32, %c1, %c0_33, %c0_34, %c0_35], %53 {strides = array<i32>} : memref<1x2x2x24x24xf32, #tpu.memory_space<vmem>>, vector<1x1x1x24x24xf32>,
    %cst_36 = arith.constant dense<0.000000e+00> : vector<2x24x32xf32>
    %54 = tpu.matmul %43, %30, %cst_36 {dimension_numbers = #tpu.dot_dimension_numbers<[2], [1], [1], [2], [0, 0, 0, 1, 1, 2], [0], [0]>} : vector<2x24x24xf32>, vector<2x24x32xf32>, vector<2x24x32xf32> -> vector<2x24x32xf32>
    %55 = vector.shape_cast %54 : vector<2x24x32xf32> to vector<48x32xf32>
    %56 = vector.extract_strided_slice %11 {offsets = [0, 0], sizes = [32, 64], strides = [1, 1]} : vector<64x64xf32> to vector<32x64xf32>
    %cst_37 = arith.constant dense<0.000000e+00> : vector<48x64xf32>
    %57 = tpu.matmul %55, %56, %cst_37 {dimension_numbers = #tpu.dot_dimension_numbers<[1], [0], [0], [1], [0, 0, 1, 1], [], []>} : vector<48x32xf32>, vector<32x64xf32>, vector<48x64xf32> -> vector<48x64xf32>
    %58 = vector.extract_strided_slice %16 {offsets = [0, 32], sizes = [48, 32], strides = [1, 1]} : vector<48x64xf32> to vector<48x32xf32>
    %59 = vector.shape_cast %58 : vector<48x32xf32> to vector<2x24x32xf32>
    %60 = vector.extract_strided_slice %17 {offsets = [0, 32], sizes = [48, 32], strides = [1, 1]} : vector<48x64xf32> to vector<48x32xf32>
    %61 = vector.shape_cast %60 : vector<48x32xf32> to vector<2x24x32xf32>
    %62 = vector.extract_strided_slice %18 {offsets = [0, 32], sizes = [48, 32], strides = [1, 1]} : vector<48x64xf32> to vector<48x32xf32>
    %63 = vector.shape_cast %62 : vector<48x32xf32> to vector<2x24x32xf32>
    %cst_38 = arith.constant dense<0.000000e+00> : vector<2x24x24xf32>
    %64 = tpu.matmul %59, %61, %cst_38 {dimension_numbers = #tpu.dot_dimension_numbers<[2], [2], [1], [1], [0, 0, 0, 1, 1, 1], [0], [0]>} : vector<2x24x32xf32>, vector<2x24x32xf32>, vector<2x24x24xf32> -> vector<2x24x24xf32>
    %65 = vector.shape_cast %24 : vector<24x24xf32> to vector<1x24x24xf32>
    %66 = vector.broadcast %65 : vector<1x24x24xf32> to vector<2x24x24xf32>
    %67 = arith.addf %64, %66 : vector<2x24x24xf32>
    %cst_39 = arith.constant dense<0xFF800000> : vector<2x24xf32>
    %68 = vector.multi_reduction <maximumf>, %67, %cst_39 [2] : vector<2x24x24xf32> to vector<2x24xf32>
    %69 = vector.shape_cast %68 : vector<2x24xf32> to vector<2x24x1xf32>
    %70 = vector.broadcast %69 : vector<2x24x1xf32> to vector<2x24x24xf32>
    %71 = arith.subf %67, %70 : vector<2x24x24xf32>
    %72 = math.exp %71 : vector<2x24x24xf32>
    %cst_40 = arith.constant dense<0.000000e+00> : vector<2x24xf32>
    %73 = vector.multi_reduction <add>, %72, %cst_40 [2] : vector<2x24x24xf32> to vector<2x24xf32>
    %74 = vector.shape_cast %73 : vector<2x24xf32> to vector<2x24x1xf32>
    %75 = vector.broadcast %74 : vector<2x24x1xf32> to vector<2x24x24xf32>
    %76 = arith.divf %72, %75 : vector<2x24x24xf32>
    %77 = vector.extract_strided_slice %76 {offsets = [0, 0, 0], sizes = [1, 24, 24], strides = [1, 1, 1]} : vector<2x24x24xf32> to vector<1x24x24xf32>
    %78 = vector.shape_cast %77 : vector<1x24x24xf32> to vector<24x24xf32>
    %c0_41 = arith.constant 0 : index
    %c0_42 = arith.constant 0 : index
    %c1_43 = arith.constant 1 : index
    %c0_44 = arith.constant 0 : index
    %c0_45 = arith.constant 0 : index
    %79 = vector.load %arg10[%c0_41, %c0_42, %c1_43, %c0_44, %c0_45] : memref<1x2x2x24x24xf32, #tpu.memory_space<vmem>>, vector<1x1x1x24x24xf32>
    %80 = vector.shape_cast %79 : vector<1x1x1x24x24xf32> to vector<24x24xf32>
    %81 = vector.shape_cast %78 : vector<24x24xf32> to vector<1x1x1x24x24xf32>
    tpu.vector_store %arg10[%c0_41, %c0_42, %c1_43, %c0_44, %c0_45], %81 {strides = array<i32>} : memref<1x2x2x24x24xf32, #tpu.memory_space<vmem>>, vector<1x1x1x24x24xf32>,
    %82 = vector.extract_strided_slice %76 {offsets = [1, 0, 0], sizes = [1, 24, 24], strides = [1, 1, 1]} : vector<2x24x24xf32> to vector<1x24x24xf32>
    %83 = vector.shape_cast %82 : vector<1x24x24xf32> to vector<24x24xf32>
    %c0_46 = arith.constant 0 : index
    %c1_47 = arith.constant 1 : index
    %c1_48 = arith.constant 1 : index
    %c0_49 = arith.constant 0 : index
    %c0_50 = arith.constant 0 : index
    %84 = vector.load %arg10[%c0_46, %c1_47, %c1_48, %c0_49, %c0_50] : memref<1x2x2x24x24xf32, #tpu.memory_space<vmem>>, vector<1x1x1x24x24xf32>
    %85 = vector.shape_cast %84 : vector<1x1x1x24x24xf32> to vector<24x24xf32>
    %86 = vector.shape_cast %83 : vector<24x24xf32> to vector<1x1x1x24x24xf32>
    tpu.vector_store %arg10[%c0_46, %c1_47, %c1_48, %c0_49, %c0_50], %86 {strides = array<i32>} : memref<1x2x2x24x24xf32, #tpu.memory_space<vmem>>, vector<1x1x1x24x24xf32>,
    %cst_51 = arith.constant dense<0.000000e+00> : vector<2x24x32xf32>
    %87 = tpu.matmul %76, %63, %cst_51 {dimension_numbers = #tpu.dot_dimension_numbers<[2], [1], [1], [2], [0, 0, 0, 1, 1, 2], [0], [0]>} : vector<2x24x24xf32>, vector<2x24x32xf32>, vector<2x24x32xf32> -> vector<2x24x32xf32>
    %88 = vector.shape_cast %87 : vector<2x24x32xf32> to vector<48x32xf32>
    %89 = vector.extract_strided_slice %11 {offsets = [32, 0], sizes = [32, 64], strides = [1, 1]} : vector<64x64xf32> to vector<32x64xf32>
    %cst_52 = arith.constant dense<0.000000e+00> : vector<48x64xf32>
    %90 = tpu.matmul %88, %89, %cst_52 {dimension_numbers = #tpu.dot_dimension_numbers<[1], [0], [0], [1], [0, 0, 1, 1], [], []>} : vector<48x32xf32>, vector<32x64xf32>, vector<48x64xf32> -> vector<48x64xf32>
    %91 = arith.addf %57, %90 : vector<48x64xf32>
    %92 = arith.addf %91, %3 : vector<48x64xf32>
    %cst_53 = arith.constant dense<0.000000e+00> : vector<48xf32>
    %93 = vector.multi_reduction <add>, %92, %cst_53 [1] : vector<48x64xf32> to vector<48xf32>
    %94 = vector.shape_cast %93 : vector<48xf32> to vector<48x1xf32>
    %cst_54 = arith.constant 6.400000e+01 : f32
    %95 = vector.broadcast %cst_54 : f32 to vector<48x1xf32>
    %96 = arith.divf %94, %95 : vector<48x1xf32>
    %97 = vector.broadcast %96 : vector<48x1xf32> to vector<48x64xf32>
    %98 = arith.subf %92, %97 : vector<48x64xf32>
    %99 = arith.mulf %98, %98 : vector<48x64xf32>
    %cst_55 = arith.constant dense<0.000000e+00> : vector<48xf32>
    %100 = vector.multi_reduction <add>, %99, %cst_55 [1] : vector<48x64xf32> to vector<48xf32>
    %101 = vector.shape_cast %100 : vector<48xf32> to vector<48x1xf32>
    %cst_56 = arith.constant 6.400000e+01 : f32
    %102 = vector.broadcast %cst_56 : f32 to vector<48x1xf32>
    %103 = arith.divf %101, %102 : vector<48x1xf32>
    %104 = vector.broadcast %96 : vector<48x1xf32> to vector<48x64xf32>
    %105 = arith.subf %92, %104 : vector<48x64xf32>
    %cst_57 = arith.constant 9.99999974E-6 : f32
    %106 = vector.broadcast %cst_57 : f32 to vector<48x1xf32>
    %107 = arith.addf %103, %106 : vector<48x1xf32>
    %108 = math.rsqrt %107 : vector<48x1xf32>
    %109 = vector.broadcast %108 : vector<48x1xf32> to vector<48x64xf32>
    %110 = arith.mulf %105, %109 : vector<48x64xf32>
    %cst_58 = arith.constant dense<0.000000e+00> : vector<48x128xf32>
    %111 = tpu.matmul %110, %13, %cst_58 {dimension_numbers = #tpu.dot_dimension_numbers<[1], [0], [0], [1], [0, 0, 1, 1], [], []>} : vector<48x64xf32>, vector<64x128xf32>, vector<48x128xf32> -> vector<48x128xf32>
    %cst_59 = arith.constant 0.000000e+00 : f32
    %112 = vector.broadcast %cst_59 : f32 to vector<48x128xf32>
    %113 = arith.maximumf %111, %112 : vector<48x128xf32>
    %cst_60 = arith.constant dense<0.000000e+00> : vector<48x64xf32>
    %114 = tpu.matmul %113, %15, %cst_60 {dimension_numbers = #tpu.dot_dimension_numbers<[1], [0], [0], [1], [0, 0, 1, 1], [], []>} : vector<48x128xf32>, vector<128x64xf32>, vector<48x64xf32> -> vector<48x64xf32>
    %115 = arith.addf %114, %110 : vector<48x64xf32>
    %cst_61 = arith.constant dense<0.000000e+00> : vector<48xf32>
    %116 = vector.multi_reduction <add>, %115, %cst_61 [1] : vector<48x64xf32> to vector<48xf32>
    %117 = vector.shape_cast %116 : vector<48xf32> to vector<48x1xf32>
    %cst_62 = arith.constant 6.400000e+01 : f32
    %118 = vector.broadcast %cst_62 : f32 to vector<48x1xf32>
    %119 = arith.divf %117, %118 : vector<48x1xf32>
    %120 = vector.broadcast %119 : vector<48x1xf32> to vector<48x64xf32>
    %121 = arith.subf %115, %120 : vector<48x64xf32>
    %122 = arith.mulf %121, %121 : vector<48x64xf32>
    %cst_63 = arith.constant dense<0.000000e+00> : vector<48xf32>
    %123 = vector.multi_reduction <add>, %122, %cst_63 [1] : vector<48x64xf32> to vector<48xf32>
    %124 = vector.shape_cast %123 : vector<48xf32> to vector<48x1xf32>
    %cst_64 = arith.constant 6.400000e+01 : f32
    %125 = vector.broadcast %cst_64 : f32 to vector<48x1xf32>
    %126 = arith.divf %124, %125 : vector<48x1xf32>
    %127 = vector.broadcast %119 : vector<48x1xf32> to vector<48x64xf32>
    %128 = arith.subf %115, %127 : vector<48x64xf32>
    %cst_65 = arith.constant 9.99999974E-6 : f32
    %129 = vector.broadcast %cst_65 : f32 to vector<48x1xf32>
    %130 = arith.addf %126, %129 : vector<48x1xf32>
    %131 = math.rsqrt %130 : vector<48x1xf32>
    %132 = vector.broadcast %131 : vector<48x1xf32> to vector<48x64xf32>
    %133 = arith.mulf %128, %132 : vector<48x64xf32>
    %c0_66 = arith.constant 0 : index
    %c0_67 = arith.constant 0 : index
    %134 = vector.load %arg9[%c0_66, %c0_67] : memref<48x64xf32, #tpu.memory_space<vmem>>, vector<48x64xf32>
    tpu.vector_store %arg9[%c0_66, %c0_67], %133 {strides = array<i32>} : memref<48x64xf32, #tpu.memory_space<vmem>>, vector<48x64xf32>,
    return
  }
  func.func @transform_0(%arg0: i32, %arg1: i32) -> (i32, i32) {
    %c0_i32 = arith.constant 0 : i32
    %c0_i32_0 = arith.constant 0 : i32
    return %arg0, %c0_i32 : i32, i32
  }
  func.func @transform_1(%arg0: i32, %arg1: i32) -> (i32, i32, i32) {
    %c0_i32 = arith.constant 0 : i32
    %c0_i32_0 = arith.constant 0 : i32
    %c0_i32_1 = arith.constant 0 : i32
    return %arg1, %c0_i32, %c0_i32_0 : i32, i32, i32
  }
  func.func @transform_2(%arg0: i32, %arg1: i32) -> (i32, i32, i32) {
    %c0_i32 = arith.constant 0 : i32
    %c0_i32_0 = arith.constant 0 : i32
    %c0_i32_1 = arith.constant 0 : i32
    return %arg1, %c0_i32, %c0_i32_0 : i32, i32, i32
  }
  func.func @transform_3(%arg0: i32, %arg1: i32) -> (i32, i32, i32) {
    %c0_i32 = arith.constant 0 : i32
    %c0_i32_0 = arith.constant 0 : i32
    %c0_i32_1 = arith.constant 0 : i32
    return %arg1, %c0_i32, %c0_i32_0 : i32, i32, i32
  }
  func.func @transform_4(%arg0: i32, %arg1: i32) -> (i32, i32, i32) {
    %c0_i32 = arith.constant 0 : i32
    %c0_i32_0 = arith.constant 0 : i32
    %c0_i32_1 = arith.constant 0 : i32
    return %arg1, %c0_i32, %c0_i32_0 : i32, i32, i32
  }
  func.func @transform_5(%arg0: i32, %arg1: i32) -> (i32, i32, i32) {
    %c0_i32 = arith.constant 0 : i32
    %c0_i32_0 = arith.constant 0 : i32
    %c0_i32_1 = arith.constant 0 : i32
    return %arg1, %c0_i32, %c0_i32_0 : i32, i32, i32
  }
  func.func @transform_6(%arg0: i32, %arg1: i32) -> (i32, i32, i32) {
    %c0_i32 = arith.constant 0 : i32
    %c0_i32_0 = arith.constant 0 : i32
    %c0_i32_1 = arith.constant 0 : i32
    return %arg1, %c0_i32, %c0_i32_0 : i32, i32, i32
  }
  func.func @transform_7(%arg0: i32, %arg1: i32) -> (i32, i32) {
    %c0_i32 = arith.constant 0 : i32
    %c0_i32_0 = arith.constant 0 : i32
    return %arg0, %c0_i32 : i32, i32
  }
  func.func @transform_8(%arg0: i32, %arg1: i32) -> (i32, i32, i32, i32, i32) {
    %c0_i32 = arith.constant 0 : i32
    %c0_i32_0 = arith.constant 0 : i32
    %c0_i32_1 = arith.constant 0 : i32
    %c0_i32_2 = arith.constant 0 : i32
    return %arg1, %arg0, %c0_i32, %c0_i32_0, %c0_i32_1 : i32, i32, i32, i32, i32
  }
}

</mosaic_0001>

<llo_original>
// kernel: decoder_forward.1
$region0: #{decoder_forward.1}
  #allocation0 [shape = 'u32[]', space=smem, size = 0x4, offset = 0x4, fixed_abs, tag = 'smem constant byte address 0x4 - core index']
  #allocation1 [shape = 'u32[144,128]{1,0:T(1,128)}', space=vmem, size = 0x12000, scoped, tag = 'internal scratch']
  %s0 = inlined_call_operand.vmem [shape: f32[48,64], index: 0, kind: input, shape index: {}]
  %s1 = inlined_call_operand.vmem [shape: f32[1,64,64], index: 1, kind: input, shape index: {}]
  %s2 = inlined_call_operand.vmem [shape: f32[1,64,64], index: 2, kind: input, shape index: {}]
  %s3 = inlined_call_operand.vmem [shape: f32[1,64,64], index: 3, kind: input, shape index: {}]
  %s4 = inlined_call_operand.vmem [shape: f32[1,64,64], index: 4, kind: input, shape index: {}]
  %s5 = inlined_call_operand.vmem [shape: f32[1,64,128], index: 5, kind: input, shape index: {}]
  %s6 = inlined_call_operand.vmem [shape: f32[1,128,64], index: 6, kind: input, shape index: {}]
  %s7 = inlined_call_operand.vmem [shape: f32[48,64], index: 7, kind: output, shape index: {0}]
  %s8 = inlined_call_operand.vmem [shape: f32[1,2,2,24,24], index: 8, kind: output, shape index: {1}]
  %9 = xla_tuple %s7, %s8
  %s10 = sld [smem:[#allocation0]]
  $region50: #{decoder_forward.1} parent=0
    _
  %s12 = ssub.s32 1, %s10
  %s13 = scalar_select 0, %s12, %s10
  // Predicated region
  $region2: #{decoder_forward.1} parent=0 // pred_check
    _
  $region3: #{decoder_forward.1} parent=0 // pred_check_branch
    %15 = sbr.rel (0) target = $region5
  $region4: #{decoder_forward.1} parent=0 // pred_region
    _
  $region5: #{decoder_forward.1} parent=0 // pred_fallthru
    _
  // Predicated region
  $region6: #{decoder_forward.1} parent=0 // pred_check
    _
  $region7: #{decoder_forward.1} parent=0 // pred_check_branch
    %17 = sbr.rel (0) target = $region9
  $region8: #{decoder_forward.1} parent=0 // pred_region
    _
  $region9: #{decoder_forward.1} parent=0 // pred_fallthru
    _
  // Predicated region
  $region10: #{decoder_forward.1} parent=0 // pred_check
    _
  $region11: #{decoder_forward.1} parent=0 // pred_check_branch
    %19 = sbr.rel (0) target = $region13
  $region12: #{decoder_forward.1} parent=0 // pred_region
    _
  $region13: #{decoder_forward.1} parent=0 // pred_fallthru
    _
  // Predicated region
  $region14: #{decoder_forward.1} parent=0 // pred_check
    _
  $region15: #{decoder_forward.1} parent=0 // pred_check_branch
    %21 = sbr.rel (0) target = $region17
  $region16: #{decoder_forward.1} parent=0 // pred_region
    _
  $region17: #{decoder_forward.1} parent=0 // pred_fallthru
    _
  // Predicated region
  $region18: #{decoder_forward.1} parent=0 // pred_check
    _
  $region19: #{decoder_forward.1} parent=0 // pred_check_branch
    %23 = sbr.rel (0) target = $region21
  $region20: #{decoder_forward.1} parent=0 // pred_region
    _
  $region21: #{decoder_forward.1} parent=0 // pred_fallthru
    _
  // Predicated region
  $region22: #{decoder_forward.1} parent=0 // pred_check
    _
  $region23: #{decoder_forward.1} parent=0 // pred_check_branch
    %25 = sbr.rel (0) target = $region25
  $region24: #{decoder_forward.1} parent=0 // pred_region
    _
  $region25: #{decoder_forward.1} parent=0 // pred_fallthru
    _
  // Predicated region
  $region26: #{decoder_forward.1} parent=0 // pred_check
    _
  $region27: #{decoder_forward.1} parent=0 // pred_check_branch
    %27 = sbr.rel (0) target = $region29
  $region28: #{decoder_forward.1} parent=0 // pred_region
    _
  $region29: #{decoder_forward.1} parent=0 // pred_fallthru
    _
  %p28 = scmp.eq.s32.totalorder 0, 0
  // Predicated region
  $region30: #{decoder_forward.1} parent=0 // pred_check
    %p29 = pneg %p28
  $region31: #{decoder_forward.1} parent=0 // pred_check_branch
    %31 = sbr.rel (%p29) target = $region33
  $region32: #{decoder_forward.1} parent=0 // pred_region
    %v32 = vld [vmem:[%s0] sm:$0xff]
    %v33 = vld [vmem:[%s0 + $0x8] sm:$0xff]
    %v34 = vld [vmem:[%s0 + $0x10] sm:$0xff]
    %v35 = vld [vmem:[%s0 + $0x18] sm:$0xff]
    %v36 = vld [vmem:[%s0 + $0x20] sm:$0xff]
    %v37 = vld [vmem:[%s0 + $0x28] sm:$0xff]
    %vm38 = vcmask 523264
    %39 = vst.msk [vmem:[%s7] sm:$0xff] %vm38, %v32
    %40 = vst.msk [vmem:[%s7 + $0x8] sm:$0xff] %vm38, %v33
    %41 = vst.msk [vmem:[%s7 + $0x10] sm:$0xff] %vm38, %v34
    %42 = vst.msk [vmem:[%s7 + $0x18] sm:$0xff] %vm38, %v35
    %43 = vst.msk [vmem:[%s7 + $0x20] sm:$0xff] %vm38, %v36
    %44 = vst.msk [vmem:[%s7 + $0x28] sm:$0xff] %vm38, %v37
  $region33: #{decoder_forward.1} parent=0 // pred_fallthru
    _
  %v45 = vld [vmem:[%s7] sm:$0xff]
  %v46 = vld [vmem:[%s7 + $0x8] sm:$0xff]
  %v47 = vld [vmem:[%s7 + $0x10] sm:$0xff]
  %v48 = vld [vmem:[%s7 + $0x18] sm:$0xff]
  %v49 = vld [vmem:[%s7 + $0x20] sm:$0xff]
  %v50 = vld [vmem:[%s7 + $0x28] sm:$0xff]
  %v51 = vld [vmem:[%s1] sm:$0xff]
  %v52 = vld [vmem:[%s1 + $0x8] sm:$0xff]
  %v53 = vld [vmem:[%s1 + $0x10] sm:$0xff]
  %v54 = vld [vmem:[%s1 + $0x18] sm:$0xff]
  %v55 = vld [vmem:[%s1 + $0x20] sm:$0xff]
  %v56 = vld [vmem:[%s1 + $0x28] sm:$0xff]
  %v57 = vld [vmem:[%s1 + $0x30] sm:$0xff]
  %v58 = vld [vmem:[%s1 + $0x38] sm:$0xff]
  %v59 = vld [vmem:[%s2] sm:$0xff]
  %v60 = vld [vmem:[%s2 + $0x8] sm:$0xff]
  %v61 = vld [vmem:[%s2 + $0x10] sm:$0xff]
  %v62 = vld [vmem:[%s2 + $0x18] sm:$0xff]
  %v63 = vld [vmem:[%s2 + $0x20] sm:$0xff]
  %v64 = vld [vmem:[%s2 + $0x28] sm:$0xff]
  %v65 = vld [vmem:[%s2 + $0x30] sm:$0xff]
  %v66 = vld [vmem:[%s2 + $0x38] sm:$0xff]
  %v67 = vld [vmem:[%s3] sm:$0xff]
  %v68 = vld [vmem:[%s3 + $0x8] sm:$0xff]
  %v69 = vld [vmem:[%s3 + $0x10] sm:$0xff]
  %v70 = vld [vmem:[%s3 + $0x18] sm:$0xff]
  %v71 = vld [vmem:[%s3 + $0x20] sm:$0xff]
  %v72 = vld [vmem:[%s3 + $0x28] sm:$0xff]
  %v73 = vld [vmem:[%s3 + $0x30] sm:$0xff]
  %v74 = vld [vmem:[%s3 + $0x38] sm:$0xff]
  %v75 = vld [vmem:[%s4] sm:$0xff]
  %v76 = vld [vmem:[%s4 + $0x8] sm:$0xff]
  %v77 = vld [vmem:[%s4 + $0x10] sm:$0xff]
  %v78 = vld [vmem:[%s4 + $0x18] sm:$0xff]
  %v79 = vld [vmem:[%s4 + $0x20] sm:$0xff]
  %v80 = vld [vmem:[%s4 + $0x28] sm:$0xff]
  %v81 = vld [vmem:[%s4 + $0x30] sm:$0xff]
  %v82 = vld [vmem:[%s4 + $0x38] sm:$0xff]
  %v83 = vld [vmem:[%s5] sm:$0xff]
  %v84 = vld [vmem:[%s5 + $0x8] sm:$0xff]
  %v85 = vld [vmem:[%s5 + $0x10] sm:$0xff]
  %v86 = vld [vmem:[%s5 + $0x18] sm:$0xff]
  %v87 = vld [vmem:[%s5 + $0x20] sm:$0xff]
  %v88 = vld [vmem:[%s5 + $0x28] sm:$0xff]
  %v89 = vld [vmem:[%s5 + $0x30] sm:$0xff]
  %v90 = vld [vmem:[%s5 + $0x38] sm:$0xff]
  %v91 = vld [vmem:[%s6] sm:$0xff]
  %v92 = vld [vmem:[%s6 + $0x8] sm:$0xff]
  %v93 = vld [vmem:[%s6 + $0x10] sm:$0xff]
  %v94 = vld [vmem:[%s6 + $0x18] sm:$0xff]
  %v95 = vld [vmem:[%s6 + $0x20] sm:$0xff]
  %v96 = vld [vmem:[%s6 + $0x28] sm:$0xff]
  %v97 = vld [vmem:[%s6 + $0x30] sm:$0xff]
  %v98 = vld [vmem:[%s6 + $0x38] sm:$0xff]
  %v99 = vld [vmem:[%s6 + $0x40] sm:$0xff]
  %v100 = vld [vmem:[%s6 + $0x48] sm:$0xff]
  %v101 = vld [vmem:[%s6 + $0x50] sm:$0xff]
  %v102 = vld [vmem:[%s6 + $0x58] sm:$0xff]
  %v103 = vld [vmem:[%s6 + $0x60] sm:$0xff]
  %v104 = vld [vmem:[%s6 + $0x68] sm:$0xff]
  %v105 = vld [vmem:[%s6 + $0x70] sm:$0xff]
  %v106 = vld [vmem:[%s6 + $0x78] sm:$0xff]
  %vm107 = vcmask 523264
  %v109 = vsel %vm107, %v45, 0
  %v112 = vsel %vm107, %v46, 0
  %v115 = vsel %vm107, %v47, 0
  %v118 = vsel %vm107, %v48, 0
  %v121 = vsel %vm107, %v49, 0
  %v124 = vsel %vm107, %v50, 0
  %126 = vmatprep.subr.mxu0 0.0
  %127 = vmatpush1.msra.mxu0 %v51
  %128 = vmatprep.subr.mxu0 0.0
  %129 = vmatpush1.msra.mxu0 %v52
  %130 = vmatprep.subr.mxu0 0.0
  %131 = vmatpush1.msra.mxu0 %v53
  %132 = vmatprep.subr.mxu0 0.0
  %133 = vmatpush1.msra.mxu0 %v54
  %134 = vmatprep.subr.mxu0 0.0
  %135 = vmatpush1.msra.mxu0 %v55
  %136 = vmatprep.subr.mxu0 0.0
  %137 = vmatpush1.msra.mxu0 %v56
  %138 = vmatprep.subr.mxu0 0.0
  %139 = vmatpush1.msra.mxu0 %v57
  %140 = vmatprep.subr.mxu0 0.0
  %141 = vmatpush1.msra.mxu0 %v58
  %142 = vmatprep.subr.mxu0 0.0
  %143 = vmatpush1.msra.mxu0 0.0
  %144 = vmatprep.subr.mxu0 0.0
  %145 = vmatpush1.msra.mxu0 0.0
  %146 = vmatprep.subr.mxu0 0.0
  %147 = vmatpush1.msra.mxu0 0.0
  %148 = vmatprep.subr.mxu0 0.0
  %149 = vmatpush1.msra.mxu0 0.0
  %150 = vmatprep.subr.mxu0 0.0
  %151 = vmatpush1.msra.mxu0 0.0
  %152 = vmatprep.subr.mxu0 0.0
  %153 = vmatpush1.msra.mxu0 0.0
  %154 = vmatprep.subr.mxu0 0.0
  %155 = vmatpush1.msra.mxu0 0.0
  %156 = vmatprep.subr.mxu0 0.0
  %157 = vmatpush1.msra.mxu0 0.0
  %158 = vmatprep.subr.mxu0 0.0
  %159 = vmatpush1.msra.mxu0 0.0
  %160 = vmatprep.subr.mxu0 0.0
  %161 = vmatpush1.msra.mxu0 0.0
  %162 = vmatprep.subr.mxu0 0.0
  %163 = vmatpush1.msra.mxu0 0.0
  %164 = vmatprep.subr.mxu0 0.0
  %165 = vmatpush1.msra.mxu0 0.0
  %166 = vmatprep.subr.mxu0 0.0
  %167 = vmatpush1.msra.mxu0 0.0
  %168 = vmatprep.subr.mxu0 0.0
  %169 = vmatpush1.msra.mxu0 0.0
  %170 = vmatprep.subr.mxu0 0.0
  %171 = vmatpush1.msra.mxu0 0.0
  %172 = vmatprep.subr.mxu0 0.0
  %173 = vmatpush1.msra.mxu0 0.0
  %174 = vmatprep.subr.mxu0 0.0
  %175 = vmatpush1.msra.mxu0 0.0
  %176 = vmatprep.subr.mxu0 0.0
  %177 = vmatpush1.msra.mxu0 0.0
  %178 = vmatprep.subr.mxu0 0.0
  %179 = vmatpush1.msra.mxu0 0.0
  %180 = vmatprep.subr.mxu0 0.0
  %181 = vmatpush1.msra.mxu0 0.0
  %182 = vmatprep.subr.mxu0 0.0
  %183 = vmatpush1.msra.mxu0 0.0
  %184 = vmatprep.subr.mxu0 0.0
  %185 = vmatpush1.msra.mxu0 0.0
  %186 = vmatprep.subr.mxu0 0.0
  %187 = vmatpush1.msra.mxu0 0.0
  %188 = vmatprep.subr.mxu0 0.0
  %189 = vmatpush1.msra.mxu0 0.0
  %190 = vmatprep.mubr.f32.mxu0 0.0
  %191 = vmatmul.mubr.f32.gmra.mrb[0].mxu0 %v109
  %v192 = vpop.f32.mrb[0].mxu0
  %v193 = vadd.f32 0.0, %v192
  %v194 = vpop.f32.mrb[0].mxu0
  %195 = vmatprep.mubr.f32.mxu0 0.0
  %196 = vmatmul.mubr.f32.gmra.mrb[0].mxu0 %v112
  %v197 = vpop.f32.mrb[0].mxu0
  %v198 = vadd.f32 0.0, %v197
  %v199 = vpop.f32.mrb[0].mxu0
  %200 = vmatprep.mubr.f32.mxu0 0.0
  %201 = vmatmul.mubr.f32.gmra.mrb[0].mxu0 %v115
  %v202 = vpop.f32.mrb[0].mxu0
  %v203 = vadd.f32 0.0, %v202
  %v204 = vpop.f32.mrb[0].mxu0
  %205 = vmatprep.mubr.f32.mxu0 0.0
  %206 = vmatmul.mubr.f32.gmra.mrb[0].mxu0 %v118
  %v207 = vpop.f32.mrb[0].mxu0
  %v208 = vadd.f32 0.0, %v207
  %v209 = vpop.f32.mrb[0].mxu0
  %210 = vmatprep.mubr.f32.mxu0 0.0
  %211 = vmatmul.mubr.f32.gmra.mrb[0].mxu0 %v121
  %v212 = vpop.f32.mrb[0].mxu0
  %v213 = vadd.f32 0.0, %v212
  %v214 = vpop.f32.mrb[0].mxu0
  %215 = vmatprep.mubr.f32.mxu0 0.0
  %216 = vmatmul.mubr.f32.gmra.mrb[0].mxu0 %v124
  %v217 = vpop.f32.mrb[0].mxu0
  %v218 = vadd.f32 0.0, %v217
  %v219 = vpop.f32.mrb[0].mxu0
  %220 = vdwg.mxu0
  %221 = vmatprep.subr.mxu0 0.0
  %222 = vmatpush1.msra.mxu0 %v59
  %223 = vmatprep.subr.mxu0 0.0
  %224 = vmatpush1.msra.mxu0 %v60
  %225 = vmatprep.subr.mxu0 0.0
  %226 = vmatpush1.msra.mxu0 %v61
  %227 = vmatprep.subr.mxu0 0.0
  %228 = vmatpush1.msra.mxu0 %v62
  %229 = vmatprep.subr.mxu0 0.0
  %230 = vmatpush1.msra.mxu0 %v63
  %231 = vmatprep.subr.mxu0 0.0
  %232 = vmatpush1.msra.mxu0 %v64
  %233 = vmatprep.subr.mxu0 0.0
  %234 = vmatpush1.msra.mxu0 %v65
  %235 = vmatprep.subr.mxu0 0.0
  %236 = vmatpush1.msra.mxu0 %v66
  %237 = vmatprep.subr.mxu0 0.0
  %238 = vmatpush1.msra.mxu0 0.0
  %239 = vmatprep.subr.mxu0 0.0
  %240 = vmatpush1.msra.mxu0 0.0
  %241 = vmatprep.subr.mxu0 0.0
  %242 = vmatpush1.msra.mxu0 0.0
  %243 = vmatprep.subr.mxu0 0.0
  %244 = vmatpush1.msra.mxu0 0.0
  %245 = vmatprep.subr.mxu0 0.0
  %246 = vmatpush1.msra.mxu0 0.0
  %247 = vmatprep.subr.mxu0 0.0
  %248 = vmatpush1.msra.mxu0 0.0
  %249 = vmatprep.subr.mxu0 0.0
  %250 = vmatpush1.msra.mxu0 0.0
  %251 = vmatprep.subr.mxu0 0.0
  %252 = vmatpush1.msra.mxu0 0.0
  %253 = vmatprep.subr.mxu0 0.0
  %254 = vmatpush1.msra.mxu0 0.0
  %255 = vmatprep.subr.mxu0 0.0
  %256 = vmatpush1.msra.mxu0 0.0
  %257 = vmatprep.subr.mxu0 0.0
  %258 = vmatpush1.msra.mxu0 0.0
  %259 = vmatprep.subr.mxu0 0.0
  %260 = vmatpush1.msra.mxu0 0.0
  %261 = vmatprep.subr.mxu0 0.0
  %262 = vmatpush1.msra.mxu0 0.0
  %263 = vmatprep.subr.mxu0 0.0
  %264 = vmatpush1.msra.mxu0 0.0
  %265 = vmatprep.subr.mxu0 0.0
  %266 = vmatpush1.msra.mxu0 0.0
  %267 = vmatprep.subr.mxu0 0.0
  %268 = vmatpush1.msra.mxu0 0.0
  %269 = vmatprep.subr.mxu0 0.0
  %270 = vmatpush1.msra.mxu0 0.0
  %271 = vmatprep.subr.mxu0 0.0
  %272 = vmatpush1.msra.mxu0 0.0
  %273 = vmatprep.subr.mxu0 0.0
  %274 = vmatpush1.msra.mxu0 0.0
  %275 = vmatprep.subr.mxu0 0.0
  %276 = vmatpush1.msra.mxu0 0.0
  %277 = vmatprep.subr.mxu0 0.0
  %278 = vmatpush1.msra.mxu0 0.0
  %279 = vmatprep.subr.mxu0 0.0
  %280 = vmatpush1.msra.mxu0 0.0
  %281 = vmatprep.subr.mxu0 0.0
  %282 = vmatpush1.msra.mxu0 0.0
  %283 = vmatprep.subr.mxu0 0.0
  %284 = vmatpush1.msra.mxu0 0.0
  %285 = vmatprep.mubr.f32.mxu0 0.0
  %286 = vmatmul.mubr.f32.gmra.mrb[0].mxu0 %v109
  %v287 = vpop.f32.mrb[0].mxu0
  %v288 = vadd.f32 0.0, %v287
  %v289 = vpop.f32.mrb[0].mxu0
  %290 = vmatprep.mubr.f32.mxu0 0.0
  %291 = vmatmul.mubr.f32.gmra.mrb[0].mxu0 %v112
  %v292 = vpop.f32.mrb[0].mxu0
  %v293 = vadd.f32 0.0, %v292
  %v294 = vpop.f32.mrb[0].mxu0
  %295 = vmatprep.mubr.f32.mxu0 0.0
  %296 = vmatmul.mubr.f32.gmra.mrb[0].mxu0 %v115
  %v297 = vpop.f32.mrb[0].mxu0
  %v298 = vadd.f32 0.0, %v297
  %v299 = vpop.f32.mrb[0].mxu0
  %300 = vmatprep.mubr.f32.mxu0 0.0
  %301 = vmatmul.mubr.f32.gmra.mrb[0].mxu0 %v118
  %v302 = vpop.f32.mrb[0].mxu0
  %v303 = vadd.f32 0.0, %v302
  %v304 = vpop.f32.mrb[0].mxu0
  %305 = vmatprep.mubr.f32.mxu0 0.0
  %306 = vmatmul.mubr.f32.gmra.mrb[0].mxu0 %v121
  %v307 = vpop.f32.mrb[0].mxu0
  %v308 = vadd.f32 0.0, %v307
  %v309 = vpop.f32.mrb[0].mxu0
  %310 = vmatprep.mubr.f32.mxu0 0.0
  %311 = vmatmul.mubr.f32.gmra.mrb[0].mxu0 %v124
  %v312 = vpop.f32.mrb[0].mxu0
  %v313 = vadd.f32 0.0, %v312
  %v314 = vpop.f32.mrb[0].mxu0
  %315 = vdwg.mxu0
  %316 = vmatprep.subr.mxu0 0.0
  %317 = vmatpush1.msra.mxu0 %v67
  %318 = vmatprep.subr.mxu0 0.0
  %319 = vmatpush1.msra.mxu0 %v68
  %320 = vmatprep.subr.mxu0 0.0
  %321 = vmatpush1.msra.mxu0 %v69
  %322 = vmatprep.subr.mxu0 0.0
  %323 = vmatpush1.msra.mxu0 %v70
  %324 = vmatprep.subr.mxu0 0.0
  %325 = vmatpush1.msra.mxu0 %v71
  %326 = vmatprep.subr.mxu0 0.0
  %327 = vmatpush1.msra.mxu0 %v72
  %328 = vmatprep.subr.mxu0 0.0
  %329 = vmatpush1.msra.mxu0 %v73
  %330 = vmatprep.subr.mxu0 0.0
  %331 = vmatpush1.msra.mxu0 %v74
  %332 = vmatprep.subr.mxu0 0.0
  %333 = vmatpush1.msra.mxu0 0.0
  %334 = vmatprep.subr.mxu0 0.0
  %335 = vmatpush1.msra.mxu0 0.0
  %336 = vmatprep.subr.mxu0 0.0
  %337 = vmatpush1.msra.mxu0 0.0
  %338 = vmatprep.subr.mxu0 0.0
  %339 = vmatpush1.msra.mxu0 0.0
  %340 = vmatprep.subr.mxu0 0.0
  %341 = vmatpush1.msra.mxu0 0.0
  %342 = vmatprep.subr.mxu0 0.0
  %343 = vmatpush1.msra.mxu0 0.0
  %344 = vmatprep.subr.mxu0 0.0
  %345 = vmatpush1.msra.mxu0 0.0
  %346 = vmatprep.subr.mxu0 0.0
  %347 = vmatpush1.msra.mxu0 0.0
  %348 = vmatprep.subr.mxu0 0.0
  %349 = vmatpush1.msra.mxu0 0.0
  %350 = vmatprep.subr.mxu0 0.0
  %351 = vmatpush1.msra.mxu0 0.0
  %352 = vmatprep.subr.mxu0 0.0
  %353 = vmatpush1.msra.mxu0 0.0
  %354 = vmatprep.subr.mxu0 0.0
  %355 = vmatpush1.msra.mxu0 0.0
  %356 = vmatprep.subr.mxu0 0.0
  %357 = vmatpush1.msra.mxu0 0.0
  %358 = vmatprep.subr.mxu0 0.0
  %359 = vmatpush1.msra.mxu0 0.0
  %360 = vmatprep.subr.mxu0 0.0
  %361 = vmatpush1.msra.mxu0 0.0
  %362 = vmatprep.subr.mxu0 0.0
  %363 = vmatpush1.msra.mxu0 0.0
  %364 = vmatprep.subr.mxu0 0.0
  %365 = vmatpush1.msra.mxu0 0.0
  %366 = vmatprep.subr.mxu0 0.0
  %367 = vmatpush1.msra.mxu0 0.0
  %368 = vmatprep.subr.mxu0 0.0
  %369 = vmatpush1.msra.mxu0 0.0
  %370 = vmatprep.subr.mxu0 0.0
  %371 = vmatpush1.msra.mxu0 0.0
  %372 = vmatprep.subr.mxu0 0.0
  %373 = vmatpush1.msra.mxu0 0.0
  %374 = vmatprep.subr.mxu0 0.0
  %375 = vmatpush1.msra.mxu0 0.0
  %376 = vmatprep.subr.mxu0 0.0
  %377 = vmatpush1.msra.mxu0 0.0
  %378 = vmatprep.subr.mxu0 0.0
  %379 = vmatpush1.msra.mxu0 0.0
  %380 = vmatprep.mubr.f32.mxu0 0.0
  %381 = vmatmul.mubr.f32.gmra.mrb[0].mxu0 %v109
  %v382 = vpop.f32.mrb[0].mxu0
  %v383 = vadd.f32 0.0, %v382
  %v384 = vpop.f32.mrb[0].mxu0
  %385 = vmatprep.mubr.f32.mxu0 0.0
  %386 = vmatmul.mubr.f32.gmra.mrb[0].mxu0 %v112
  %v387 = vpop.f32.mrb[0].mxu0
  %v388 = vadd.f32 0.0, %v387
  %v389 = vpop.f32.mrb[0].mxu0
  %390 = vmatprep.mubr.f32.mxu0 0.0
  %391 = vmatmul.mubr.f32.gmra.mrb[0].mxu0 %v115
  %v392 = vpop.f32.mrb[0].mxu0
  %v393 = vadd.f32 0.0, %v392
  %v394 = vpop.f32.mrb[0].mxu0
  %395 = vmatprep.mubr.f32.mxu0 0.0
  %396 = vmatmul.mubr.f32.gmra.mrb[0].mxu0 %v118
  %v397 = vpop.f32.mrb[0].mxu0
  %v398 = vadd.f32 0.0, %v397
  %v399 = vpop.f32.mrb[0].mxu0
  %400 = vmatprep.mubr.f32.mxu0 0.0
  %401 = vmatmul.mubr.f32.gmra.mrb[0].mxu0 %v121
  %v402 = vpop.f32.mrb[0].mxu0
  %v403 = vadd.f32 0.0, %v402
  %v404 = vpop.f32.mrb[0].mxu0
  %405 = vmatprep.mubr.f32.mxu0 0.0
  %406 = vmatmul.mubr.f32.gmra.mrb[0].mxu0 %v124
  %v407 = vpop.f32.mrb[0].mxu0
  %v408 = vadd.f32 0.0, %v407
  %v409 = vpop.f32.mrb[0].mxu0
  %410 = vdwg.mxu0
  %v411 = vlaneseq
  %v412 = vand.u32 %v411, 127
  %vm413 = vcmp.lt.s32.totalorder %v412, 22
  %v414 = vsel %vm413, 0.0, -1e+09
  %vm415 = vcmask 261120
  %v417 = vsel %vm415, %v193, 0
  %v420 = vsel %vm415, %v198, 0
  %v423 = vsel %vm415, %v203, 0
  %v426 = vsel %vm415, %v288, 0
  %v429 = vsel %vm415, %v293, 0
  %v432 = vsel %vm415, %v298, 0
  %434 = vmatprep.subr.mxu0 0.0
  %435 = vmatpush1.xpose.msra.mxu0 %v426
  %436 = vmatprep.subr.mxu0 0.0
  %437 = vmatpush1.xpose.msra.mxu0 %v429
  %438 = vmatprep.subr.mxu0 0.0
  %439 = vmatpush1.xpose.msra.mxu0 %v432
  %440 = vmatprep.subr.mxu0 0.0
  %441 = vmatpush1.xpose.msra.mxu0 0.0
  %442 = vmatprep.subr.mxu0 0.0
  %443 = vmatpush1.xpose.msra.mxu0 0.0
  %444 = vmatprep.subr.mxu0 0.0
  %445 = vmatpush1.xpose.msra.mxu0 0.0
  %446 = vmatprep.subr.mxu0 0.0
  %447 = vmatpush1.xpose.msra.mxu0 0.0
  %448 = vmatprep.subr.mxu0 0.0
  %449 = vmatpush1.xpose.msra.mxu0 0.0
  %450 = vmatprep.subr.mxu0 0.0
  %451 = vmatpush1.xpose.msra.mxu0 0.0
  %452 = vmatprep.subr.mxu0 0.0
  %453 = vmatpush1.xpose.msra.mxu0 0.0
  %454 = vmatprep.subr.mxu0 0.0
  %455 = vmatpush1.xpose.msra.mxu0 0.0
  %456 = vmatprep.subr.mxu0 0.0
  %457 = vmatpush1.xpose.msra.mxu0 0.0
  %458 = vmatprep.subr.mxu0 0.0
  %459 = vmatpush1.xpose.msra.mxu0 0.0
  %460 = vmatprep.subr.mxu0 0.0
  %461 = vmatpush1.xpose.msra.mxu0 0.0
  %462 = vmatprep.subr.mxu0 0.0
  %463 = vmatpush1.xpose.msra.mxu0 0.0
  %464 = vmatprep.subr.mxu0 0.0
  %465 = vmatpush1.xpose.msra.mxu0 0.0
  %466 = vmatprep.subr.mxu0 0.0
  %467 = vmatpush1.xpose.msra.mxu0 0.0
  %468 = vmatprep.subr.mxu0 0.0
  %469 = vmatpush1.xpose.msra.mxu0 0.0
  %470 = vmatprep.subr.mxu0 0.0
  %471 = vmatpush1.xpose.msra.mxu0 0.0
  %472 = vmatprep.subr.mxu0 0.0
  %473 = vmatpush1.xpose.msra.mxu0 0.0
  %474 = vmatprep.subr.mxu0 0.0
  %475 = vmatpush1.xpose.msra.mxu0 0.0
  %476 = vmatprep.subr.mxu0 0.0
  %477 = vmatpush1.xpose.msra.mxu0 0.0
  %478 = vmatprep.subr.mxu0 0.0
  %479 = vmatpush1.xpose.msra.mxu0 0.0
  %480 = vmatprep.subr.mxu0 0.0
  %481 = vmatpush1.xpose.msra.mxu0 0.0
  %482 = vmatprep.subr.mxu0 0.0
  %483 = vmatpush1.xpose.msra.mxu0 0.0
  %484 = vmatprep.subr.mxu0 0.0
  %485 = vmatpush1.xpose.msra.mxu0 0.0
  %486 = vmatprep.subr.mxu0 0.0
  %487 = vmatpush1.xpose.msra.mxu0 0.0
  %488 = vmatprep.subr.mxu0 0.0
  %489 = vmatpush1.xpose.msra.mxu0 0.0
  %490 = vmatprep.subr.mxu0 0.0
  %491 = vmatpush1.xpose.msra.mxu0 0.0
  %492 = vmatprep.subr.mxu0 0.0
  %493 = vmatpush1.xpose.msra.mxu0 0.0
  %494 = vmatprep.subr.mxu0 0.0
  %495 = vmatpush1.xpose.msra.mxu0 0.0
  %496 = vmatprep.subr.mxu0 0.0
  %497 = vmatpush1.xpose.msra.mxu0 0.0
  %498 = vmatprep.mubr.f32.mxu0 0.0
  %499 = vmatmul.mubr.f32.gmra.mrb[0].mxu0 %v417
  %v500 = vpop.f32.mrb[0].mxu0
  %v501 = vadd.f32 %v414, %v500
  %v502 = vpop.f32.mrb[0].mxu0
  %503 = vmatprep.mubr.f32.mxu0 0.0
  %504 = vmatmul.mubr.f32.gmra.mrb[0].mxu0 %v420
  %v505 = vpop.f32.mrb[0].mxu0
  %v506 = vadd.f32 %v414, %v505
  %v507 = vpop.f32.mrb[0].mxu0
  %508 = vmatprep.mubr.f32.mxu0 0.0
  %509 = vmatmul.mubr.f32.gmra.mrb[0].mxu0 %v423
  %v510 = vpop.f32.mrb[0].mxu0
  %v511 = vadd.f32 %v414, %v510
  %v512 = vpop.f32.mrb[0].mxu0
  %513 = vdwg.mxu0
  %v515 = vsel %vm415, %v208, 0
  %v518 = vsel %vm415, %v213, 0
  %v521 = vsel %vm415, %v218, 0
  %v524 = vsel %vm415, %v303, 0
  %v527 = vsel %vm415, %v308, 0
  %v530 = vsel %vm415, %v313, 0
  %532 = vmatprep.subr.mxu0 0.0
  %533 = vmatpush1.xpose.msra.mxu0 %v524
  %534 = vmatprep.subr.mxu0 0.0
  %535 = vmatpush1.xpose.msra.mxu0 %v527
  %536 = vmatprep.subr.mxu0 0.0
  %537 = vmatpush1.xpose.msra.mxu0 %v530
  %538 = vmatprep.subr.mxu0 0.0
  %539 = vmatpush1.xpose.msra.mxu0 0.0
  %540 = vmatprep.subr.mxu0 0.0
  %541 = vmatpush1.xpose.msra.mxu0 0.0
  %542 = vmatprep.subr.mxu0 0.0
  %543 = vmatpush1.xpose.msra.mxu0 0.0
  %544 = vmatprep.subr.mxu0 0.0
  %545 = vmatpush1.xpose.msra.mxu0 0.0
  %546 = vmatprep.subr.mxu0 0.0
  %547 = vmatpush1.xpose.msra.mxu0 0.0
  %548 = vmatprep.subr.mxu0 0.0
  %549 = vmatpush1.xpose.msra.mxu0 0.0
  %550 = vmatprep.subr.mxu0 0.0
  %551 = vmatpush1.xpose.msra.mxu0 0.0
  %552 = vmatprep.subr.mxu0 0.0
  %553 = vmatpush1.xpose.msra.mxu0 0.0
  %554 = vmatprep.subr.mxu0 0.0
  %555 = vmatpush1.xpose.msra.mxu0 0.0
  %556 = vmatprep.subr.mxu0 0.0
  %557 = vmatpush1.xpose.msra.mxu0 0.0
  %558 = vmatprep.subr.mxu0 0.0
  %559 = vmatpush1.xpose.msra.mxu0 0.0
  %560 = vmatprep.subr.mxu0 0.0
  %561 = vmatpush1.xpose.msra.mxu0 0.0
  %562 = vmatprep.subr.mxu0 0.0
  %563 = vmatpush1.xpose.msra.mxu0 0.0
  %564 = vmatprep.subr.mxu0 0.0
  %565 = vmatpush1.xpose.msra.mxu0 0.0
  %566 = vmatprep.subr.mxu0 0.0
  %567 = vmatpush1.xpose.msra.mxu0 0.0
  %568 = vmatprep.subr.mxu0 0.0
  %569 = vmatpush1.xpose.msra.mxu0 0.0
  %570 = vmatprep.subr.mxu0 0.0
  %571 = vmatpush1.xpose.msra.mxu0 0.0
  %572 = vmatprep.subr.mxu0 0.0
  %573 = vmatpush1.xpose.msra.mxu0 0.0
  %574 = vmatprep.subr.mxu0 0.0
  %575 = vmatpush1.xpose.msra.mxu0 0.0
  %576 = vmatprep.subr.mxu0 0.0
  %577 = vmatpush1.xpose.msra.mxu0 0.0
  %578 = vmatprep.subr.mxu0 0.0
  %579 = vmatpush1.xpose.msra.mxu0 0.0
  %580 = vmatprep.subr.mxu0 0.0
  %581 = vmatpush1.xpose.msra.mxu0 0.0
  %582 = vmatprep.subr.mxu0 0.0
  %583 = vmatpush1.xpose.msra.mxu0 0.0
  %584 = vmatprep.subr.mxu0 0.0
  %585 = vmatpush1.xpose.msra.mxu0 0.0
  %586 = vmatprep.subr.mxu0 0.0
  %587 = vmatpush1.xpose.msra.mxu0 0.0
  %588 = vmatprep.subr.mxu0 0.0
  %589 = vmatpush1.xpose.msra.mxu0 0.0
  %590 = vmatprep.subr.mxu0 0.0
  %591 = vmatpush1.xpose.msra.mxu0 0.0
  %592 = vmatprep.subr.mxu0 0.0
  %593 = vmatpush1.xpose.msra.mxu0 0.0
  %594 = vmatprep.subr.mxu0 0.0
  %595 = vmatpush1.xpose.msra.mxu0 0.0
  %596 = vmatprep.mubr.f32.mxu0 0.0
  %597 = vmatmul.mubr.f32.gmra.mrb[0].mxu0 %v515
  %v598 = vpop.f32.mrb[0].mxu0
  %v599 = vadd.f32 %v414, %v598
  %v600 = vpop.f32.mrb[0].mxu0
  %601 = vmatprep.mubr.f32.mxu0 0.0
  %602 = vmatmul.mubr.f32.gmra.mrb[0].mxu0 %v518
  %v603 = vpop.f32.mrb[0].mxu0
  %v604 = vadd.f32 %v414, %v603
  %v605 = vpop.f32.mrb[0].mxu0
  %606 = vmatprep.mubr.f32.mxu0 0.0
  %607 = vmatmul.mubr.f32.gmra.mrb[0].mxu0 %v521
  %v608 = vpop.f32.mrb[0].mxu0
  %v609 = vadd.f32 %v414, %v608
  %v610 = vpop.f32.mrb[0].mxu0
  %611 = vdwg.mxu0
  %vm612 = vcmask 195584
  %v613 = vsel %vm612, %v501, -inf
  %614 = vmax.xlane.f32.xlu0 %v613
  %v615 = vpop.xlane.xlu0 %614
  %v616 = vsel %vm612, %v506, -inf
  %617 = vmax.xlane.f32.xlu0 %v616
  %v618 = vpop.xlane.xlu0 %617
  %v619 = vsel %vm612, %v511, -inf
  %620 = vmax.xlane.f32.xlu0 %v619
  %v621 = vpop.xlane.xlu0 %620
  %v622 = vsel %vm612, %v599, -inf
  %623 = vmax.xlane.f32.xlu0 %v622
  %v624 = vpop.xlane.xlu0 %623
  %v625 = vsel %vm612, %v604, -inf
  %626 = vmax.xlane.f32.xlu0 %v625
  %v627 = vpop.xlane.xlu0 %626
  %v628 = vsel %vm612, %v609, -inf
  %629 = vmax.xlane.f32.xlu0 %v628
  %v630 = vpop.xlane.xlu0 %629
  %v631 = vsub.f32 %v501, %v615
  %v632 = vsub.f32 %v506, %v618
  %v633 = vsub.f32 %v511, %v621
  %v634 = vsub.f32 %v599, %v624
  %v635 = vsub.f32 %v604, %v627
  %v636 = vsub.f32 %v609, %v630
  %v637 = vmul.f32 %v631, 1.442695
  %v638 = vpow.pop %v637
  %v639 = vmul.f32 %v632, 1.442695
  %v640 = vpow.pop %v639
  %v641 = vmul.f32 %v633, 1.442695
  %v642 = vpow.pop %v641
  %v643 = vmul.f32 %v634, 1.442695
  %v644 = vpow.pop %v643
  %v645 = vmul.f32 %v635, 1.442695
  %v646 = vpow.pop %v645
  %v647 = vmul.f32 %v636, 1.442695
  %v648 = vpow.pop %v647
  %v649 = vsel %vm612, %v638, 0.0
  %650 = vadd.xlane.f32.xlu0 %v649
  %v651 = vpop.xlane.xlu0 %650
  %v652 = vsel %vm612, %v640, 0.0
  %653 = vadd.xlane.f32.xlu0 %v652
  %v654 = vpop.xlane.xlu0 %653
  %v655 = vsel %vm612, %v642, 0.0
  %656 = vadd.xlane.f32.xlu0 %v655
  %v657 = vpop.xlane.xlu0 %656
  %v658 = vsel %vm612, %v644, 0.0
  %659 = vadd.xlane.f32.xlu0 %v658
  %v660 = vpop.xlane.xlu0 %659
  %v661 = vsel %vm612, %v646, 0.0
  %662 = vadd.xlane.f32.xlu0 %v661
  %v663 = vpop.xlane.xlu0 %662
  %v664 = vsel %vm612, %v648, 0.0
  %665 = vadd.xlane.f32.xlu0 %v664
  %v666 = vpop.xlane.xlu0 %665
  %v667 = vrcp.pop %v651
  %v668 = vmul.f32 %v638, %v667
  %v669 = vrcp.pop %v654
  %v670 = vmul.f32 %v640, %v669
  %v671 = vrcp.pop %v657
  %v672 = vmul.f32 %v642, %v671
  %v673 = vrcp.pop %v660
  %v674 = vmul.f32 %v644, %v673
  %v675 = vrcp.pop %v663
  %v676 = vmul.f32 %v646, %v675
  %v677 = vrcp.pop %v666
  %v678 = vmul.f32 %v648, %v677
  %679 = vst.msk [vmem:[%s8] sm:$0xff] %vm612, %v668
  %680 = vst.msk [vmem:[%s8 + $0x8] sm:$0xff] %vm612, %v670
  %681 = vst.msk [vmem:[%s8 + $0x10] sm:$0xff] %vm612, %v672
  %s682 = scalar_lea.vmem %s8, 48
  %683 = vst.msk [vmem:[%s682] sm:$0xff] %vm612, %v674
  %684 = vst.msk [vmem:[%s682 + $0x8] sm:$0xff] %vm612, %v676
  %685 = vst.msk [vmem:[%s682 + $0x10] sm:$0xff] %vm612, %v678
  %v687 = vsel %vm612, %v668, 0
  %v690 = vsel %vm612, %v670, 0
  %v693 = vsel %vm612, %v672, 0
  %695 = vmatprep.subr.mxu0 0.0
  %696 = vmatpush1.msra.mxu0 %v383
  %697 = vmatprep.subr.mxu0 0.0
  %698 = vmatpush1.msra.mxu0 %v388
  %699 = vmatprep.subr.mxu0 0.0
  %700 = vmatpush1.msra.mxu0 %v393
  %701 = vmatprep.subr.mxu0 0.0
  %702 = vmatpush1.msra.mxu0 0.0
  %703 = vmatprep.subr.mxu0 0.0
  %704 = vmatpush1.msra.mxu0 0.0
  %705 = vmatprep.subr.mxu0 0.0
  %706 = vmatpush1.msra.mxu0 0.0
  %707 = vmatprep.subr.mxu0 0.0
  %708 = vmatpush1.msra.mxu0 0.0
  %709 = vmatprep.subr.mxu0 0.0
  %710 = vmatpush1.msra.mxu0 0.0
  %711 = vmatprep.subr.mxu0 0.0
  %712 = vmatpush1.msra.mxu0 0.0
  %713 = vmatprep.subr.mxu0 0.0
  %714 = vmatpush1.msra.mxu0 0.0
  %715 = vmatprep.subr.mxu0 0.0
  %716 = vmatpush1.msra.mxu0 0.0
  %717 = vmatprep.subr.mxu0 0.0
  %718 = vmatpush1.msra.mxu0 0.0
  %719 = vmatprep.subr.mxu0 0.0
  %720 = vmatpush1.msra.mxu0 0.0
  %721 = vmatprep.subr.mxu0 0.0
  %722 = vmatpush1.msra.mxu0 0.0
  %723 = vmatprep.subr.mxu0 0.0
  %724 = vmatpush1.msra.mxu0 0.0
  %725 = vmatprep.subr.mxu0 0.0
  %726 = vmatpush1.msra.mxu0 0.0
  %727 = vmatprep.subr.mxu0 0.0
  %728 = vmatpush1.msra.mxu0 0.0
  %729 = vmatprep.subr.mxu0 0.0
  %730 = vmatpush1.msra.mxu0 0.0
  %731 = vmatprep.subr.mxu0 0.0
  %732 = vmatpush1.msra.mxu0 0.0
  %733 = vmatprep.subr.mxu0 0.0
  %734 = vmatpush1.msra.mxu0 0.0
  %735 = vmatprep.subr.mxu0 0.0
  %736 = vmatpush1.msra.mxu0 0.0
  %737 = vmatprep.subr.mxu0 0.0
  %738 = vmatpush1.msra.mxu0 0.0
  %739 = vmatprep.subr.mxu0 0.0
  %740 = vmatpush1.msra.mxu0 0.0
  %741 = vmatprep.subr.mxu0 0.0
  %742 = vmatpush1.msra.mxu0 0.0
  %743 = vmatprep.subr.mxu0 0.0
  %744 = vmatpush1.msra.mxu0 0.0
  %745 = vmatprep.subr.mxu0 0.0
  %746 = vmatpush1.msra.mxu0 0.0
  %747 = vmatprep.subr.mxu0 0.0
  %748 = vmatpush1.msra.mxu0 0.0
  %749 = vmatprep.subr.mxu0 0.0
  %750 = vmatpush1.msra.mxu0 0.0
  %751 = vmatprep.subr.mxu0 0.0
  %752 = vmatpush1.msra.mxu0 0.0
  %753 = vmatprep.subr.mxu0 0.0
  %754 = vmatpush1.msra.mxu0 0.0
  %755 = vmatprep.subr.mxu0 0.0
  %756 = vmatpush1.msra.mxu0 0.0
  %757 = vmatprep.subr.mxu0 0.0
  %758 = vmatpush1.msra.mxu0 0.0
  %759 = vmatprep.mubr.f32.mxu0 0.0
  %760 = vmatmul.mubr.f32.gmra.mrb[0].mxu0 %v687
  %v761 = vpop.f32.mrb[0].mxu0
  %v762 = vadd.f32 0.0, %v761
  %v763 = vpop.f32.mrb[0].mxu0
  %764 = vmatprep.mubr.f32.mxu0 0.0
  %765 = vmatmul.mubr.f32.gmra.mrb[0].mxu0 %v690
  %v766 = vpop.f32.mrb[0].mxu0
  %v767 = vadd.f32 0.0, %v766
  %v768 = vpop.f32.mrb[0].mxu0
  %769 = vmatprep.mubr.f32.mxu0 0.0
  %770 = vmatmul.mubr.f32.gmra.mrb[0].mxu0 %v693
  %v771 = vpop.f32.mrb[0].mxu0
  %v772 = vadd.f32 0.0, %v771
  %v773 = vpop.f32.mrb[0].mxu0
  %774 = vdwg.mxu0
  %v776 = vsel %vm612, %v674, 0
  %v779 = vsel %vm612, %v676, 0
  %v782 = vsel %vm612, %v678, 0
  %784 = vmatprep.subr.mxu0 0.0
  %785 = vmatpush1.msra.mxu0 %v398
  %786 = vmatprep.subr.mxu0 0.0
  %787 = vmatpush1.msra.mxu0 %v403
  %788 = vmatprep.subr.mxu0 0.0
  %789 = vmatpush1.msra.mxu0 %v408
  %790 = vmatprep.subr.mxu0 0.0
  %791 = vmatpush1.msra.mxu0 0.0
  %792 = vmatprep.subr.mxu0 0.0
  %793 = vmatpush1.msra.mxu0 0.0
  %794 = vmatprep.subr.mxu0 0.0
  %795 = vmatpush1.msra.mxu0 0.0
  %796 = vmatprep.subr.mxu0 0.0
  %797 = vmatpush1.msra.mxu0 0.0
  %798 = vmatprep.subr.mxu0 0.0
  %799 = vmatpush1.msra.mxu0 0.0
  %800 = vmatprep.subr.mxu0 0.0
  %801 = vmatpush1.msra.mxu0 0.0
  %802 = vmatprep.subr.mxu0 0.0
  %803 = vmatpush1.msra.mxu0 0.0
  %804 = vmatprep.subr.mxu0 0.0
  %805 = vmatpush1.msra.mxu0 0.0
  %806 = vmatprep.subr.mxu0 0.0
  %807 = vmatpush1.msra.mxu0 0.0
  %808 = vmatprep.subr.mxu0 0.0
  %809 = vmatpush1.msra.mxu0 0.0
  %810 = vmatprep.subr.mxu0 0.0
  %811 = vmatpush1.msra.mxu0 0.0
  %812 = vmatprep.subr.mxu0 0.0
  %813 = vmatpush1.msra.mxu0 0.0
  %814 = vmatprep.subr.mxu0 0.0
  %815 = vmatpush1.msra.mxu0 0.0
  %816 = vmatprep.subr.mxu0 0.0
  %817 = vmatpush1.msra.mxu0 0.0
  %818 = vmatprep.subr.mxu0 0.0
  %819 = vmatpush1.msra.mxu0 0.0
  %820 = vmatprep.subr.mxu0 0.0
  %821 = vmatpush1.msra.mxu0 0.0
  %822 = vmatprep.subr.mxu0 0.0
  %823 = vmatpush1.msra.mxu0 0.0
  %824 = vmatprep.subr.mxu0 0.0
  %825 = vmatpush1.msra.mxu0 0.0
  %826 = vmatprep.subr.mxu0 0.0
  %827 = vmatpush1.msra.mxu0 0.0
  %828 = vmatprep.subr.mxu0 0.0
  %829 = vmatpush1.msra.mxu0 0.0
  %830 = vmatprep.subr.mxu0 0.0
  %831 = vmatpush1.msra.mxu0 0.0
  %832 = vmatprep.subr.mxu0 0.0
  %833 = vmatpush1.msra.mxu0 0.0
  %834 = vmatprep.subr.mxu0 0.0
  %835 = vmatpush1.msra.mxu0 0.0
  %836 = vmatprep.subr.mxu0 0.0
  %837 = vmatpush1.msra.mxu0 0.0
  %838 = vmatprep.subr.mxu0 0.0
  %839 = vmatpush1.msra.mxu0 0.0
  %840 = vmatprep.subr.mxu0 0.0
  %841 = vmatpush1.msra.mxu0 0.0
  %842 = vmatprep.subr.mxu0 0.0
  %843 = vmatpush1.msra.mxu0 0.0
  %844 = vmatprep.subr.mxu0 0.0
  %845 = vmatpush1.msra.mxu0 0.0
  %846 = vmatprep.subr.mxu0 0.0
  %847 = vmatpush1.msra.mxu0 0.0
  %848 = vmatprep.mubr.f32.mxu0 0.0
  %849 = vmatmul.mubr.f32.gmra.mrb[0].mxu0 %v776
  %v850 = vpop.f32.mrb[0].mxu0
  %v851 = vadd.f32 0.0, %v850
  %v852 = vpop.f32.mrb[0].mxu0
  %853 = vmatprep.mubr.f32.mxu0 0.0
  %854 = vmatmul.mubr.f32.gmra.mrb[0].mxu0 %v779
  %v855 = vpop.f32.mrb[0].mxu0
  %v856 = vadd.f32 0.0, %v855
  %v857 = vpop.f32.mrb[0].mxu0
  %858 = vmatprep.mubr.f32.mxu0 0.0
  %859 = vmatmul.mubr.f32.gmra.mrb[0].mxu0 %v782
  %v860 = vpop.f32.mrb[0].mxu0
  %v861 = vadd.f32 0.0, %v860
  %v862 = vpop.f32.mrb[0].mxu0
  %863 = vdwg.mxu0
  %864 = vrot.lane.b32.xlu0 %v193, 96
  %v865 = vpop.permute.xlu0 %864
  %866 = vrot.lane.b32.xlu0 %v198, 96
  %v867 = vpop.permute.xlu0 %866
  %868 = vrot.lane.b32.xlu0 %v203, 96
  %v869 = vpop.permute.xlu0 %868
  %870 = vrot.lane.b32.xlu0 %v288, 96
  %v871 = vpop.permute.xlu0 %870
  %872 = vrot.lane.b32.xlu0 %v293, 96
  %v873 = vpop.permute.xlu0 %872
  %874 = vrot.lane.b32.xlu0 %v298, 96
  %v875 = vpop.permute.xlu0 %874
  %v876 = vsel %vm415, %v865, 0
  %v878 = vsel %vm415, %v867, 0
  %v880 = vsel %vm415, %v869, 0
  %v882 = vsel %vm415, %v871, 0
  %v884 = vsel %vm415, %v873, 0
  %v886 = vsel %vm415, %v875, 0
  %888 = vmatprep.subr.mxu0 0.0
  %889 = vmatpush1.xpose.msra.mxu0 %v882
  %890 = vmatprep.subr.mxu0 0.0
  %891 = vmatpush1.xpose.msra.mxu0 %v884
  %892 = vmatprep.subr.mxu0 0.0
  %893 = vmatpush1.xpose.msra.mxu0 %v886
  %894 = vmatprep.subr.mxu0 0.0
  %895 = vmatpush1.xpose.msra.mxu0 0.0
  %896 = vmatprep.subr.mxu0 0.0
  %897 = vmatpush1.xpose.msra.mxu0 0.0
  %898 = vmatprep.subr.mxu0 0.0
  %899 = vmatpush1.xpose.msra.mxu0 0.0
  %900 = vmatprep.subr.mxu0 0.0
  %901 = vmatpush1.xpose.msra.mxu0 0.0
  %902 = vmatprep.subr.mxu0 0.0
  %903 = vmatpush1.xpose.msra.mxu0 0.0
  %904 = vmatprep.subr.mxu0 0.0
  %905 = vmatpush1.xpose.msra.mxu0 0.0
  %906 = vmatprep.subr.mxu0 0.0
  %907 = vmatpush1.xpose.msra.mxu0 0.0
  %908 = vmatprep.subr.mxu0 0.0
  %909 = vmatpush1.xpose.msra.mxu0 0.0
  %910 = vmatprep.subr.mxu0 0.0
  %911 = vmatpush1.xpose.msra.mxu0 0.0
  %912 = vmatprep.subr.mxu0 0.0
  %913 = vmatpush1.xpose.msra.mxu0 0.0
  %914 = vmatprep.subr.mxu0 0.0
  %915 = vmatpush1.xpose.msra.mxu0 0.0
  %916 = vmatprep.subr.mxu0 0.0
  %917 = vmatpush1.xpose.msra.mxu0 0.0
  %918 = vmatprep.subr.mxu0 0.0
  %919 = vmatpush1.xpose.msra.mxu0 0.0
  %920 = vmatprep.subr.mxu0 0.0
  %921 = vmatpush1.xpose.msra.mxu0 0.0
  %922 = vmatprep.subr.mxu0 0.0
  %923 = vmatpush1.xpose.msra.mxu0 0.0
  %924 = vmatprep.subr.mxu0 0.0
  %925 = vmatpush1.xpose.msra.mxu0 0.0
  %926 = vmatprep.subr.mxu0 0.0
  %927 = vmatpush1.xpose.msra.mxu0 0.0
  %928 = vmatprep.subr.mxu0 0.0
  %929 = vmatpush1.xpose.msra.mxu0 0.0
  %930 = vmatprep.subr.mxu0 0.0
  %931 = vmatpush1.xpose.msra.mxu0 0.0
  %932 = vmatprep.subr.mxu0 0.0
  %933 = vmatpush1.xpose.msra.mxu0 0.0
  %934 = vmatprep.subr.mxu0 0.0
  %935 = vmatpush1.xpose.msra.mxu0 0.0
  %936 = vmatprep.subr.mxu0 0.0
  %937 = vmatpush1.xpose.msra.mxu0 0.0
  %938 = vmatprep.subr.mxu0 0.0
  %939 = vmatpush1.xpose.msra.mxu0 0.0
  %940 = vmatprep.subr.mxu0 0.0
  %941 = vmatpush1.xpose.msra.mxu0 0.0
  %942 = vmatprep.subr.mxu0 0.0
  %943 = vmatpush1.xpose.msra.mxu0 0.0
  %944 = vmatprep.subr.mxu0 0.0
  %945 = vmatpush1.xpose.msra.mxu0 0.0
  %946 = vmatprep.subr.mxu0 0.0
  %947 = vmatpush1.xpose.msra.mxu0 0.0
  %948 = vmatprep.subr.mxu0 0.0
  %949 = vmatpush1.xpose.msra.mxu0 0.0
  %950 = vmatprep.subr.mxu0 0.0
  %951 = vmatpush1.xpose.msra.mxu0 0.0
  %952 = vmatprep.mubr.f32.mxu0 0.0
  %953 = vmatmul.mubr.f32.gmra.mrb[0].mxu0 %v876
  %v954 = vpop.f32.mrb[0].mxu0
  %v955 = vadd.f32 %v414, %v954
  %v956 = vpop.f32.mrb[0].mxu0
  %957 = vmatprep.mubr.f32.mxu0 0.0
  %958 = vmatmul.mubr.f32.gmra.mrb[0].mxu0 %v878
  %v959 = vpop.f32.mrb[0].mxu0
  %v960 = vadd.f32 %v414, %v959
  %v961 = vpop.f32.mrb[0].mxu0
  %962 = vmatprep.mubr.f32.mxu0 0.0
  %963 = vmatmul.mubr.f32.gmra.mrb[0].mxu0 %v880
  %v964 = vpop.f32.mrb[0].mxu0
  %v965 = vadd.f32 %v414, %v964
  %v966 = vpop.f32.mrb[0].mxu0
  %967 = vdwg.mxu0
  %968 = vrot.lane.b32.xlu0 %v208, 96
  %v969 = vpop.permute.xlu0 %968
  %970 = vrot.lane.b32.xlu0 %v213, 96
  %v971 = vpop.permute.xlu0 %970
  %972 = vrot.lane.b32.xlu0 %v218, 96
  %v973 = vpop.permute.xlu0 %972
  %974 = vrot.lane.b32.xlu0 %v303, 96
  %v975 = vpop.permute.xlu0 %974
  %976 = vrot.lane.b32.xlu0 %v308, 96
  %v977 = vpop.permute.xlu0 %976
  %978 = vrot.lane.b32.xlu0 %v313, 96
  %v979 = vpop.permute.xlu0 %978
  %v980 = vsel %vm415, %v969, 0
  %v982 = vsel %vm415, %v971, 0
  %v984 = vsel %vm415, %v973, 0
  %v986 = vsel %vm415, %v975, 0
  %v988 = vsel %vm415, %v977, 0
  %v990 = vsel %vm415, %v979, 0
  %992 = vmatprep.subr.mxu0 0.0
  %993 = vmatpush1.xpose.msra.mxu0 %v986
  %994 = vmatprep.subr.mxu0 0.0
  %995 = vmatpush1.xpose.msra.mxu0 %v988
  %996 = vmatprep.subr.mxu0 0.0
  %997 = vmatpush1.xpose.msra.mxu0 %v990
  %998 = vmatprep.subr.mxu0 0.0
  %999 = vmatpush1.xpose.msra.mxu0 0.0
  %1000 = vmatprep.subr.mxu0 0.0
  %1001 = vmatpush1.xpose.msra.mxu0 0.0
  %1002 = vmatprep.subr.mxu0 0.0
  %1003 = vmatpush1.xpose.msra.mxu0 0.0
  %1004 = vmatprep.subr.mxu0 0.0
  %1005 = vmatpush1.xpose.msra.mxu0 0.0
  %1006 = vmatprep.subr.mxu0 0.0
  %1007 = vmatpush1.xpose.msra.mxu0 0.0
  %1008 = vmatprep.subr.mxu0 0.0
  %1009 = vmatpush1.xpose.msra.mxu0 0.0
  %1010 = vmatprep.subr.mxu0 0.0
  %1011 = vmatpush1.xpose.msra.mxu0 0.0
  %1012 = vmatprep.subr.mxu0 0.0
  %1013 = vmatpush1.xpose.msra.mxu0 0.0
  %1014 = vmatprep.subr.mxu0 0.0
  %1015 = vmatpush1.xpose.msra.mxu0 0.0
  %1016 = vmatprep.subr.mxu0 0.0
  %1017 = vmatpush1.xpose.msra.mxu0 0.0
  %1018 = vmatprep.subr.mxu0 0.0
  %1019 = vmatpush1.xpose.msra.mxu0 0.0
  %1020 = vmatprep.subr.mxu0 0.0
  %1021 = vmatpush1.xpose.msra.mxu0 0.0
  %1022 = vmatprep.subr.mxu0 0.0
  %1023 = vmatpush1.xpose.msra.mxu0 0.0
  %1024 = vmatprep.subr.mxu0 0.0
  %1025 = vmatpush1.xpose.msra.mxu0 0.0
  %1026 = vmatprep.subr.mxu0 0.0
  %1027 = vmatpush1.xpose.msra.mxu0 0.0
  %1028 = vmatprep.subr.mxu0 0.0
  %1029 = vmatpush1.xpose.msra.mxu0 0.0
  %1030 = vmatprep.subr.mxu0 0.0
  %1031 = vmatpush1.xpose.msra.mxu0 0.0
  %1032 = vmatprep.subr.mxu0 0.0
  %1033 = vmatpush1.xpose.msra.mxu0 0.0
  %1034 = vmatprep.subr.mxu0 0.0
  %1035 = vmatpush1.xpose.msra.mxu0 0.0
  %1036 = vmatprep.subr.mxu0 0.0
  %1037 = vmatpush1.xpose.msra.mxu0 0.0
  %1038 = vmatprep.subr.mxu0 0.0
  %1039 = vmatpush1.xpose.msra.mxu0 0.0
  %1040 = vmatprep.subr.mxu0 0.0
  %1041 = vmatpush1.xpose.msra.mxu0 0.0
  %1042 = vmatprep.subr.mxu0 0.0
  %1043 = vmatpush1.xpose.msra.mxu0 0.0
  %1044 = vmatprep.subr.mxu0 0.0
  %1045 = vmatpush1.xpose.msra.mxu0 0.0
  %1046 = vmatprep.subr.mxu0 0.0
  %1047 = vmatpush1.xpose.msra.mxu0 0.0
  %1048 = vmatprep.subr.mxu0 0.0
  %1049 = vmatpush1.xpose.msra.mxu0 0.0
  %1050 = vmatprep.subr.mxu0 0.0
  %1051 = vmatpush1.xpose.msra.mxu0 0.0
  %1052 = vmatprep.subr.mxu0 0.0
  %1053 = vmatpush1.xpose.msra.mxu0 0.0
  %1054 = vmatprep.subr.mxu0 0.0
  %1055 = vmatpush1.xpose.msra.mxu0 0.0
  %1056 = vmatprep.mubr.f32.mxu0 0.0
  %1057 = vmatmul.mubr.f32.gmra.mrb[0].mxu0 %v980
  %v1058 = vpop.f32.mrb[0].mxu0
  %v1059 = vadd.f32 %v414, %v1058
  %v1060 = vpop.f32.mrb[0].mxu0
  %1061 = vmatprep.mubr.f32.mxu0 0.0
  %1062 = vmatmul.mubr.f32.gmra.mrb[0].mxu0 %v982
  %v1063 = vpop.f32.mrb[0].mxu0
  %v1064 = vadd.f32 %v414, %v1063
  %v1065 = vpop.f32.mrb[0].mxu0
  %1066 = vmatprep.mubr.f32.mxu0 0.0
  %1067 = vmatmul.mubr.f32.gmra.mrb[0].mxu0 %v984
  %v1068 = vpop.f32.mrb[0].mxu0
  %v1069 = vadd.f32 %v414, %v1068
  %v1070 = vpop.f32.mrb[0].mxu0
  %1071 = vdwg.mxu0
  %v1072 = vsel %vm612, %v955, -inf
  %1073 = vmax.xlane.f32.xlu0 %v1072
  %v1074 = vpop.xlane.xlu0 %1073
  %v1075 = vsel %vm612, %v960, -inf
  %1076 = vmax.xlane.f32.xlu0 %v1075
  %v1077 = vpop.xlane.xlu0 %1076
  %v1078 = vsel %vm612, %v965, -inf
  %1079 = vmax.xlane.f32.xlu0 %v1078
  %v1080 = vpop.xlane.xlu0 %1079
  %v1081 = vsel %vm612, %v1059, -inf
  %1082 = vmax.xlane.f32.xlu0 %v1081
  %v1083 = vpop.xlane.xlu0 %1082
  %v1084 = vsel %vm612, %v1064, -inf
  %1085 = vmax.xlane.f32.xlu0 %v1084
  %v1086 = vpop.xlane.xlu0 %1085
  %v1087 = vsel %vm612, %v1069, -inf
  %1088 = vmax.xlane.f32.xlu0 %v1087
  %v1089 = vpop.xlane.xlu0 %1088
  %v1090 = vsub.f32 %v955, %v1074
  %v1091 = vsub.f32 %v960, %v1077
  %v1092 = vsub.f32 %v965, %v1080
  %v1093 = vsub.f32 %v1059, %v1083
  %v1094 = vsub.f32 %v1064, %v1086
  %v1095 = vsub.f32 %v1069, %v1089
  %v1096 = vmul.f32 %v1090, 1.442695
  %v1097 = vpow.pop %v1096
  %v1098 = vmul.f32 %v1091, 1.442695
  %v1099 = vpow.pop %v1098
  %v1100 = vmul.f32 %v1092, 1.442695
  %v1101 = vpow.pop %v1100
  %v1102 = vmul.f32 %v1093, 1.442695
  %v1103 = vpow.pop %v1102
  %v1104 = vmul.f32 %v1094, 1.442695
  %v1105 = vpow.pop %v1104
  %v1106 = vmul.f32 %v1095, 1.442695
  %v1107 = vpow.pop %v1106
  %v1108 = vsel %vm612, %v1097, 0.0
  %1109 = vadd.xlane.f32.xlu0 %v1108
  %v1110 = vpop.xlane.xlu0 %1109
  %v1111 = vsel %vm612, %v1099, 0.0
  %1112 = vadd.xlane.f32.xlu0 %v1111
  %v1113 = vpop.xlane.xlu0 %1112
  %v1114 = vsel %vm612, %v1101, 0.0
  %1115 = vadd.xlane.f32.xlu0 %v1114
  %v1116 = vpop.xlane.xlu0 %1115
  %v1117 = vsel %vm612, %v1103, 0.0
  %1118 = vadd.xlane.f32.xlu0 %v1117
  %v1119 = vpop.xlane.xlu0 %1118
  %v1120 = vsel %vm612, %v1105, 0.0
  %1121 = vadd.xlane.f32.xlu0 %v1120
  %v1122 = vpop.xlane.xlu0 %1121
  %v1123 = vsel %vm612, %v1107, 0.0
  %1124 = vadd.xlane.f32.xlu0 %v1123
  %v1125 = vpop.xlane.xlu0 %1124
  %v1126 = vrcp.pop %v1110
  %v1127 = vmul.f32 %v1097, %v1126
  %v1128 = vrcp.pop %v1113
  %v1129 = vmul.f32 %v1099, %v1128
  %v1130 = vrcp.pop %v1116
  %v1131 = vmul.f32 %v1101, %v1130
  %v1132 = vrcp.pop %v1119
  %v1133 = vmul.f32 %v1103, %v1132
  %v1134 = vrcp.pop %v1122
  %v1135 = vmul.f32 %v1105, %v1134
  %v1136 = vrcp.pop %v1125
  %v1137 = vmul.f32 %v1107, %v1136
  %s1138 = scalar_lea.vmem %s8, 24
  %1139 = vst.msk [vmem:[%s1138] sm:$0xff] %vm612, %v1127
  %1140 = vst.msk [vmem:[%s1138 + $0x8] sm:$0xff] %vm612, %v1129
  %1141 = vst.msk [vmem:[%s1138 + $0x10] sm:$0xff] %vm612, %v1131
  %s1142 = scalar_lea.vmem %s8, 72
  %1143 = vst.msk [vmem:[%s1142] sm:$0xff] %vm612, %v1133
  %1144 = vst.msk [vmem:[%s1142 + $0x8] sm:$0xff] %vm612, %v1135
  %1145 = vst.msk [vmem:[%s1142 + $0x10] sm:$0xff] %vm612, %v1137
  %1149 = vrot.lane.b32.xlu0 %v383, 96
  %v1150 = vpop.permute.xlu0 %1149
  %1151 = vrot.lane.b32.xlu0 %v388, 96
  %v1152 = vpop.permute.xlu0 %1151
  %1153 = vrot.lane.b32.xlu0 %v393, 96
  %v1154 = vpop.permute.xlu0 %1153
  %v1159 = vsel %vm612, %v1127, 0
  %v1162 = vsel %vm612, %v1129, 0
  %v1165 = vsel %vm612, %v1131, 0
  %1167 = vmatprep.subr.mxu0 0.0
  %1168 = vmatpush1.msra.mxu0 %v1150
  %1169 = vmatprep.subr.mxu0 0.0
  %1170 = vmatpush1.msra.mxu0 %v1152
  %1171 = vmatprep.subr.mxu0 0.0
  %1172 = vmatpush1.msra.mxu0 %v1154
  %1173 = vmatprep.subr.mxu0 0.0
  %1174 = vmatpush1.msra.mxu0 0.0
  %1175 = vmatprep.subr.mxu0 0.0
  %1176 = vmatpush1.msra.mxu0 0.0
  %1177 = vmatprep.subr.mxu0 0.0
  %1178 = vmatpush1.msra.mxu0 0.0
  %1179 = vmatprep.subr.mxu0 0.0
  %1180 = vmatpush1.msra.mxu0 0.0
  %1181 = vmatprep.subr.mxu0 0.0
  %1182 = vmatpush1.msra.mxu0 0.0
  %1183 = vmatprep.subr.mxu0 0.0
  %1184 = vmatpush1.msra.mxu0 0.0
  %1185 = vmatprep.subr.mxu0 0.0
  %1186 = vmatpush1.msra.mxu0 0.0
  %1187 = vmatprep.subr.mxu0 0.0
  %1188 = vmatpush1.msra.mxu0 0.0
  %1189 = vmatprep.subr.mxu0 0.0
  %1190 = vmatpush1.msra.mxu0 0.0
  %1191 = vmatprep.subr.mxu0 0.0
  %1192 = vmatpush1.msra.mxu0 0.0
  %1193 = vmatprep.subr.mxu0 0.0
  %1194 = vmatpush1.msra.mxu0 0.0
  %1195 = vmatprep.subr.mxu0 0.0
  %1196 = vmatpush1.msra.mxu0 0.0
  %1197 = vmatprep.subr.mxu0 0.0
  %1198 = vmatpush1.msra.mxu0 0.0
  %1199 = vmatprep.subr.mxu0 0.0
  %1200 = vmatpush1.msra.mxu0 0.0
  %1201 = vmatprep.subr.mxu0 0.0
  %1202 = vmatpush1.msra.mxu0 0.0
  %1203 = vmatprep.subr.mxu0 0.0
  %1204 = vmatpush1.msra.mxu0 0.0
  %1205 = vmatprep.subr.mxu0 0.0
  %1206 = vmatpush1.msra.mxu0 0.0
  %1207 = vmatprep.subr.mxu0 0.0
  %1208 = vmatpush1.msra.mxu0 0.0
  %1209 = vmatprep.subr.mxu0 0.0
  %1210 = vmatpush1.msra.mxu0 0.0
  %1211 = vmatprep.subr.mxu0 0.0
  %1212 = vmatpush1.msra.mxu0 0.0
  %1213 = vmatprep.subr.mxu0 0.0
  %1214 = vmatpush1.msra.mxu0 0.0
  %1215 = vmatprep.subr.mxu0 0.0
  %1216 = vmatpush1.msra.mxu0 0.0
  %1217 = vmatprep.subr.mxu0 0.0
  %1218 = vmatpush1.msra.mxu0 0.0
  %1219 = vmatprep.subr.mxu0 0.0
  %1220 = vmatpush1.msra.mxu0 0.0
  %1221 = vmatprep.subr.mxu0 0.0
  %1222 = vmatpush1.msra.mxu0 0.0
  %1223 = vmatprep.subr.mxu0 0.0
  %1224 = vmatpush1.msra.mxu0 0.0
  %1225 = vmatprep.subr.mxu0 0.0
  %1226 = vmatpush1.msra.mxu0 0.0
  %1227 = vmatprep.subr.mxu0 0.0
  %1228 = vmatpush1.msra.mxu0 0.0
  %1229 = vmatprep.subr.mxu0 0.0
  %1230 = vmatpush1.msra.mxu0 0.0
  %1231 = vmatprep.mubr.f32.mxu0 0.0
  %1232 = vmatmul.mubr.f32.gmra.mrb[0].mxu0 %v1159
  %v1233 = vpop.f32.mrb[0].mxu0
  %v1234 = vadd.f32 0.0, %v1233
  %v1235 = vpop.f32.mrb[0].mxu0
  %1236 = vmatprep.mubr.f32.mxu0 0.0
  %1237 = vmatmul.mubr.f32.gmra.mrb[0].mxu0 %v1162
  %v1238 = vpop.f32.mrb[0].mxu0
  %v1239 = vadd.f32 0.0, %v1238
  %v1240 = vpop.f32.mrb[0].mxu0
  %1241 = vmatprep.mubr.f32.mxu0 0.0
  %1242 = vmatmul.mubr.f32.gmra.mrb[0].mxu0 %v1165
  %v1243 = vpop.f32.mrb[0].mxu0
  %v1244 = vadd.f32 0.0, %v1243
  %v1245 = vpop.f32.mrb[0].mxu0
  %1246 = vdwg.mxu0
  %1250 = vrot.lane.b32.xlu0 %v398, 96
  %v1251 = vpop.permute.xlu0 %1250
  %1252 = vrot.lane.b32.xlu0 %v403, 96
  %v1253 = vpop.permute.xlu0 %1252
  %1254 = vrot.lane.b32.xlu0 %v408, 96
  %v1255 = vpop.permute.xlu0 %1254
  %v1260 = vsel %vm612, %v1133, 0
  %v1263 = vsel %vm612, %v1135, 0
  %v1266 = vsel %vm612, %v1137, 0
  %1268 = vmatprep.subr.mxu0 0.0
  %1269 = vmatpush1.msra.mxu0 %v1251
  %1270 = vmatprep.subr.mxu0 0.0
  %1271 = vmatpush1.msra.mxu0 %v1253
  %1272 = vmatprep.subr.mxu0 0.0
  %1273 = vmatpush1.msra.mxu0 %v1255
  %1274 = vmatprep.subr.mxu0 0.0
  %1275 = vmatpush1.msra.mxu0 0.0
  %1276 = vmatprep.subr.mxu0 0.0
  %1277 = vmatpush1.msra.mxu0 0.0
  %1278 = vmatprep.subr.mxu0 0.0
  %1279 = vmatpush1.msra.mxu0 0.0
  %1280 = vmatprep.subr.mxu0 0.0
  %1281 = vmatpush1.msra.mxu0 0.0
  %1282 = vmatprep.subr.mxu0 0.0
  %1283 = vmatpush1.msra.mxu0 0.0
  %1284 = vmatprep.subr.mxu0 0.0
  %1285 = vmatpush1.msra.mxu0 0.0
  %1286 = vmatprep.subr.mxu0 0.0
  %1287 = vmatpush1.msra.mxu0 0.0
  %1288 = vmatprep.subr.mxu0 0.0
  %1289 = vmatpush1.msra.mxu0 0.0
  %1290 = vmatprep.subr.mxu0 0.0
  %1291 = vmatpush1.msra.mxu0 0.0
  %1292 = vmatprep.subr.mxu0 0.0
  %1293 = vmatpush1.msra.mxu0 0.0
  %1294 = vmatprep.subr.mxu0 0.0
  %1295 = vmatpush1.msra.mxu0 0.0
  %1296 = vmatprep.subr.mxu0 0.0
  %1297 = vmatpush1.msra.mxu0 0.0
  %1298 = vmatprep.subr.mxu0 0.0
  %1299 = vmatpush1.msra.mxu0 0.0
  %1300 = vmatprep.subr.mxu0 0.0
  %1301 = vmatpush1.msra.mxu0 0.0
  %1302 = vmatprep.subr.mxu0 0.0
  %1303 = vmatpush1.msra.mxu0 0.0
  %1304 = vmatprep.subr.mxu0 0.0
  %1305 = vmatpush1.msra.mxu0 0.0
  %1306 = vmatprep.subr.mxu0 0.0
  %1307 = vmatpush1.msra.mxu0 0.0
  %1308 = vmatprep.subr.mxu0 0.0
  %1309 = vmatpush1.msra.mxu0 0.0
  %1310 = vmatprep.subr.mxu0 0.0
  %1311 = vmatpush1.msra.mxu0 0.0
  %1312 = vmatprep.subr.mxu0 0.0
  %1313 = vmatpush1.msra.mxu0 0.0
  %1314 = vmatprep.subr.mxu0 0.0
  %1315 = vmatpush1.msra.mxu0 0.0
  %1316 = vmatprep.subr.mxu0 0.0
  %1317 = vmatpush1.msra.mxu0 0.0
  %1318 = vmatprep.subr.mxu0 0.0
  %1319 = vmatpush1.msra.mxu0 0.0
  %1320 = vmatprep.subr.mxu0 0.0
  %1321 = vmatpush1.msra.mxu0 0.0
  %1322 = vmatprep.subr.mxu0 0.0
  %1323 = vmatpush1.msra.mxu0 0.0
  %1324 = vmatprep.subr.mxu0 0.0
  %1325 = vmatpush1.msra.mxu0 0.0
  %1326 = vmatprep.subr.mxu0 0.0
  %1327 = vmatpush1.msra.mxu0 0.0
  %1328 = vmatprep.subr.mxu0 0.0
  %1329 = vmatpush1.msra.mxu0 0.0
  %1330 = vmatprep.subr.mxu0 0.0
  %1331 = vmatpush1.msra.mxu0 0.0
  %1332 = vmatprep.mubr.f32.mxu0 0.0
  %1333 = vmatmul.mubr.f32.gmra.mrb[0].mxu0 %v1260
  %v1334 = vpop.f32.mrb[0].mxu0
  %v1335 = vadd.f32 0.0, %v1334
  %v1336 = vpop.f32.mrb[0].mxu0
  %1337 = vmatprep.mubr.f32.mxu0 0.0
  %1338 = vmatmul.mubr.f32.gmra.mrb[0].mxu0 %v1263
  %v1339 = vpop.f32.mrb[0].mxu0
  %v1340 = vadd.f32 0.0, %v1339
  %v1341 = vpop.f32.mrb[0].mxu0
  %1342 = vmatprep.mubr.f32.mxu0 0.0
  %1343 = vmatmul.mubr.f32.gmra.mrb[0].mxu0 %v1266
  %v1344 = vpop.f32.mrb[0].mxu0
  %v1345 = vadd.f32 0.0, %v1344
  %v1346 = vpop.f32.mrb[0].mxu0
  %1347 = vdwg.mxu0
  %v1349 = vsel %vm415, %v1234, 0
  %v1352 = vsel %vm415, %v1239, 0
  %v1355 = vsel %vm415, %v1244, 0
  %v1358 = vsel %vm415, %v1335, 0
  %v1361 = vsel %vm415, %v1340, 0
  %v1364 = vsel %vm415, %v1345, 0
  %1366 = vmatprep.subr.mxu0 0.0
  %1367 = vmatpush1.msra.mxu0 %v79
  %1368 = vmatprep.subr.mxu0 0.0
  %1369 = vmatpush1.msra.mxu0 %v80
  %1370 = vmatprep.subr.mxu0 0.0
  %1371 = vmatpush1.msra.mxu0 %v81
  %1372 = vmatprep.subr.mxu0 0.0
  %1373 = vmatpush1.msra.mxu0 %v82
  %1374 = vmatprep.subr.mxu0 0.0
  %1375 = vmatpush1.msra.mxu0 0.0
  %1376 = vmatprep.subr.mxu0 0.0
  %1377 = vmatpush1.msra.mxu0 0.0
  %1378 = vmatprep.subr.mxu0 0.0
  %1379 = vmatpush1.msra.mxu0 0.0
  %1380 = vmatprep.subr.mxu0 0.0
  %1381 = vmatpush1.msra.mxu0 0.0
  %1382 = vmatprep.subr.mxu0 0.0
  %1383 = vmatpush1.msra.mxu0 0.0
  %1384 = vmatprep.subr.mxu0 0.0
  %1385 = vmatpush1.msra.mxu0 0.0
  %1386 = vmatprep.subr.mxu0 0.0
  %1387 = vmatpush1.msra.mxu0 0.0
  %1388 = vmatprep.subr.mxu0 0.0
  %1389 = vmatpush1.msra.mxu0 0.0
  %1390 = vmatprep.subr.mxu0 0.0
  %1391 = vmatpush1.msra.mxu0 0.0
  %1392 = vmatprep.subr.mxu0 0.0
  %1393 = vmatpush1.msra.mxu0 0.0
  %1394 = vmatprep.subr.mxu0 0.0
  %1395 = vmatpush1.msra.mxu0 0.0
  %1396 = vmatprep.subr.mxu0 0.0
  %1397 = vmatpush1.msra.mxu0 0.0
  %1398 = vmatprep.subr.mxu0 0.0
  %1399 = vmatpush1.msra.mxu0 0.0
  %1400 = vmatprep.subr.mxu0 0.0
  %1401 = vmatpush1.msra.mxu0 0.0
  %1402 = vmatprep.subr.mxu0 0.0
  %1403 = vmatpush1.msra.mxu0 0.0
  %1404 = vmatprep.subr.mxu0 0.0
  %1405 = vmatpush1.msra.mxu0 0.0
  %1406 = vmatprep.subr.mxu0 0.0
  %1407 = vmatpush1.msra.mxu0 0.0
  %1408 = vmatprep.subr.mxu0 0.0
  %1409 = vmatpush1.msra.mxu0 0.0
  %1410 = vmatprep.subr.mxu0 0.0
  %1411 = vmatpush1.msra.mxu0 0.0
  %1412 = vmatprep.subr.mxu0 0.0
  %1413 = vmatpush1.msra.mxu0 0.0
  %1414 = vmatprep.subr.mxu0 0.0
  %1415 = vmatpush1.msra.mxu0 0.0
  %1416 = vmatprep.subr.mxu0 0.0
  %1417 = vmatpush1.msra.mxu0 0.0
  %1418 = vmatprep.subr.mxu0 0.0
  %1419 = vmatpush1.msra.mxu0 0.0
  %1420 = vmatprep.subr.mxu0 0.0
  %1421 = vmatpush1.msra.mxu0 0.0
  %1422 = vmatprep.subr.mxu0 0.0
  %1423 = vmatpush1.msra.mxu0 0.0
  %1424 = vmatprep.subr.mxu0 0.0
  %1425 = vmatpush1.msra.mxu0 0.0
  %1426 = vmatprep.subr.mxu0 0.0
  %1427 = vmatpush1.msra.mxu0 0.0
  %1428 = vmatprep.subr.mxu0 0.0
  %1429 = vmatpush1.msra.mxu0 0.0
  %1430 = vmatprep.mubr.f32.mxu0 0.0
  %1431 = vmatmul.mubr.f32.gmra.mrb[0].mxu0 %v1349
  %v1432 = vpop.f32.mrb[0].mxu0
  %v1433 = vadd.f32 0.0, %v1432
  %v1434 = vpop.f32.mrb[0].mxu0
  %1435 = vmatprep.mubr.f32.mxu0 0.0
  %1436 = vmatmul.mubr.f32.gmra.mrb[0].mxu0 %v1352
  %v1437 = vpop.f32.mrb[0].mxu0
  %v1438 = vadd.f32 0.0, %v1437
  %v1439 = vpop.f32.mrb[0].mxu0
  %1440 = vmatprep.mubr.f32.mxu0 0.0
  %1441 = vmatmul.mubr.f32.gmra.mrb[0].mxu0 %v1355
  %v1442 = vpop.f32.mrb[0].mxu0
  %v1443 = vadd.f32 0.0, %v1442
  %v1444 = vpop.f32.mrb[0].mxu0
  %1445 = vmatprep.mubr.f32.mxu0 0.0
  %1446 = vmatmul.mubr.f32.gmra.mrb[0].mxu0 %v1358
  %v1447 = vpop.f32.mrb[0].mxu0
  %v1448 = vadd.f32 0.0, %v1447
  %v1449 = vpop.f32.mrb[0].mxu0
  %1450 = vmatprep.mubr.f32.mxu0 0.0
  %1451 = vmatmul.mubr.f32.gmra.mrb[0].mxu0 %v1361
  %v1452 = vpop.f32.mrb[0].mxu0
  %v1453 = vadd.f32 0.0, %v1452
  %v1454 = vpop.f32.mrb[0].mxu0
  %1455 = vmatprep.mubr.f32.mxu0 0.0
  %1456 = vmatmul.mubr.f32.gmra.mrb[0].mxu0 %v1364
  %v1457 = vpop.f32.mrb[0].mxu0
  %v1458 = vadd.f32 0.0, %v1457
  %v1459 = vpop.f32.mrb[0].mxu0
  %1460 = vdwg.mxu0
  %v1462 = vsel %vm415, %v762, 0
  %v1465 = vsel %vm415, %v767, 0
  %v1468 = vsel %vm415, %v772, 0
  %v1471 = vsel %vm415, %v851, 0
  %v1474 = vsel %vm415, %v856, 0
  %v1477 = vsel %vm415, %v861, 0
  %1479 = vmatprep.subr.mxu0 0.0
  %1480 = vmatpush1.msra.mxu0 %v75
  %1481 = vmatprep.subr.mxu0 0.0
  %1482 = vmatpush1.msra.mxu0 %v76
  %1483 = vmatprep.subr.mxu0 0.0
  %1484 = vmatpush1.msra.mxu0 %v77
  %1485 = vmatprep.subr.mxu0 0.0
  %1486 = vmatpush1.msra.mxu0 %v78
  %1487 = vmatprep.subr.mxu0 0.0
  %1488 = vmatpush1.msra.mxu0 0.0
  %1489 = vmatprep.subr.mxu0 0.0
  %1490 = vmatpush1.msra.mxu0 0.0
  %1491 = vmatprep.subr.mxu0 0.0
  %1492 = vmatpush1.msra.mxu0 0.0
  %1493 = vmatprep.subr.mxu0 0.0
  %1494 = vmatpush1.msra.mxu0 0.0
  %1495 = vmatprep.subr.mxu0 0.0
  %1496 = vmatpush1.msra.mxu0 0.0
  %1497 = vmatprep.subr.mxu0 0.0
  %1498 = vmatpush1.msra.mxu0 0.0
  %1499 = vmatprep.subr.mxu0 0.0
  %1500 = vmatpush1.msra.mxu0 0.0
  %1501 = vmatprep.subr.mxu0 0.0
  %1502 = vmatpush1.msra.mxu0 0.0
  %1503 = vmatprep.subr.mxu0 0.0
  %1504 = vmatpush1.msra.mxu0 0.0
  %1505 = vmatprep.subr.mxu0 0.0
  %1506 = vmatpush1.msra.mxu0 0.0
  %1507 = vmatprep.subr.mxu0 0.0
  %1508 = vmatpush1.msra.mxu0 0.0
  %1509 = vmatprep.subr.mxu0 0.0
  %1510 = vmatpush1.msra.mxu0 0.0
  %1511 = vmatprep.subr.mxu0 0.0
  %1512 = vmatpush1.msra.mxu0 0.0
  %1513 = vmatprep.subr.mxu0 0.0
  %1514 = vmatpush1.msra.mxu0 0.0
  %1515 = vmatprep.subr.mxu0 0.0
  %1516 = vmatpush1.msra.mxu0 0.0
  %1517 = vmatprep.subr.mxu0 0.0
  %1518 = vmatpush1.msra.mxu0 0.0
  %1519 = vmatprep.subr.mxu0 0.0
  %1520 = vmatpush1.msra.mxu0 0.0
  %1521 = vmatprep.subr.mxu0 0.0
  %1522 = vmatpush1.msra.mxu0 0.0
  %1523 = vmatprep.subr.mxu0 0.0
  %1524 = vmatpush1.msra.mxu0 0.0
  %1525 = vmatprep.subr.mxu0 0.0
  %1526 = vmatpush1.msra.mxu0 0.0
  %1527 = vmatprep.subr.mxu0 0.0
  %1528 = vmatpush1.msra.mxu0 0.0
  %1529 = vmatprep.subr.mxu0 0.0
  %1530 = vmatpush1.msra.mxu0 0.0
  %1531 = vmatprep.subr.mxu0 0.0
  %1532 = vmatpush1.msra.mxu0 0.0
  %1533 = vmatprep.subr.mxu0 0.0
  %1534 = vmatpush1.msra.mxu0 0.0
  %1535 = vmatprep.subr.mxu0 0.0
  %1536 = vmatpush1.msra.mxu0 0.0
  %1537 = vmatprep.subr.mxu0 0.0
  %1538 = vmatpush1.msra.mxu0 0.0
  %1539 = vmatprep.subr.mxu0 0.0
  %1540 = vmatpush1.msra.mxu0 0.0
  %1541 = vmatprep.subr.mxu0 0.0
  %1542 = vmatpush1.msra.mxu0 0.0
  %1543 = vmatprep.mubr.f32.mxu0 0.0
  %1544 = vmatmul.mubr.f32.gmra.mrb[0].mxu0 %v1462
  %v1545 = vpop.f32.mrb[0].mxu0
  %v1546 = vadd.f32 %v1433, %v1545
  %v1547 = vpop.f32.mrb[0].mxu0
  %1548 = vmatprep.mubr.f32.mxu0 0.0
  %1549 = vmatmul.mubr.f32.gmra.mrb[0].mxu0 %v1465
  %v1550 = vpop.f32.mrb[0].mxu0
  %v1551 = vadd.f32 %v1438, %v1550
  %v1552 = vpop.f32.mrb[0].mxu0
  %1553 = vmatprep.mubr.f32.mxu0 0.0
  %1554 = vmatmul.mubr.f32.gmra.mrb[0].mxu0 %v1468
  %v1555 = vpop.f32.mrb[0].mxu0
  %v1556 = vadd.f32 %v1443, %v1555
  %v1557 = vpop.f32.mrb[0].mxu0
  %1558 = vmatprep.mubr.f32.mxu0 0.0
  %1559 = vmatmul.mubr.f32.gmra.mrb[0].mxu0 %v1471
  %v1560 = vpop.f32.mrb[0].mxu0
  %v1561 = vadd.f32 %v1448, %v1560
  %v1562 = vpop.f32.mrb[0].mxu0
  %1563 = vmatprep.mubr.f32.mxu0 0.0
  %1564 = vmatmul.mubr.f32.gmra.mrb[0].mxu0 %v1474
  %v1565 = vpop.f32.mrb[0].mxu0
  %v1566 = vadd.f32 %v1453, %v1565
  %v1567 = vpop.f32.mrb[0].mxu0
  %1568 = vmatprep.mubr.f32.mxu0 0.0
  %1569 = vmatmul.mubr.f32.gmra.mrb[0].mxu0 %v1477
  %v1570 = vpop.f32.mrb[0].mxu0
  %v1571 = vadd.f32 %v1458, %v1570
  %v1572 = vpop.f32.mrb[0].mxu0
  %1573 = vdwg.mxu0
  %v1574 = vadd.f32 %v1546, %v45
  %v1575 = vadd.f32 %v1551, %v46
  %v1576 = vadd.f32 %v1556, %v47
  %v1577 = vadd.f32 %v1561, %v48
  %v1578 = vadd.f32 %v1566, %v49
  %v1579 = vadd.f32 %v1571, %v50
  %v1580 = vsel %vm107, %v1574, 0.0
  %1581 = vadd.xlane.f32.xlu0 %v1580
  %v1582 = vpop.xlane.xlu0 %1581
  %v1583 = vsel %vm107, %v1575, 0.0
  %1584 = vadd.xlane.f32.xlu0 %v1583
  %v1585 = vpop.xlane.xlu0 %1584
  %v1586 = vsel %vm107, %v1576, 0.0
  %1587 = vadd.xlane.f32.xlu0 %v1586
  %v1588 = vpop.xlane.xlu0 %1587
  %v1589 = vsel %vm107, %v1577, 0.0
  %1590 = vadd.xlane.f32.xlu0 %v1589
  %v1591 = vpop.xlane.xlu0 %1590
  %v1592 = vsel %vm107, %v1578, 0.0
  %1593 = vadd.xlane.f32.xlu0 %v1592
  %v1594 = vpop.xlane.xlu0 %1593
  %v1595 = vsel %vm107, %v1579, 0.0
  %1596 = vadd.xlane.f32.xlu0 %v1595
  %v1597 = vpop.xlane.xlu0 %1596
  %v1598 = vrcp.pop 64.0
  %v1599 = vmul.f32 %v1582, %v1598
  %v1600 = vmul.f32 %v1585, %v1598
  %v1601 = vmul.f32 %v1588, %v1598
  %v1602 = vmul.f32 %v1591, %v1598
  %v1603 = vmul.f32 %v1594, %v1598
  %v1604 = vmul.f32 %v1597, %v1598
  %v1605 = vsub.f32 %v1574, %v1599
  %v1606 = vsub.f32 %v1575, %v1600
  %v1607 = vsub.f32 %v1576, %v1601
  %v1608 = vsub.f32 %v1577, %v1602
  %v1609 = vsub.f32 %v1578, %v1603
  %v1610 = vsub.f32 %v1579, %v1604
  %v1611 = vmul.f32 %v1605, %v1605
  %v1612 = vmul.f32 %v1606, %v1606
  %v1613 = vmul.f32 %v1607, %v1607
  %v1614 = vmul.f32 %v1608, %v1608
  %v1615 = vmul.f32 %v1609, %v1609
  %v1616 = vmul.f32 %v1610, %v1610
  %v1617 = vsel %vm107, %v1611, 0.0
  %1618 = vadd.xlane.f32.xlu0 %v1617
  %v1619 = vpop.xlane.xlu0 %1618
  %v1620 = vsel %vm107, %v1612, 0.0
  %1621 = vadd.xlane.f32.xlu0 %v1620
  %v1622 = vpop.xlane.xlu0 %1621
  %v1623 = vsel %vm107, %v1613, 0.0
  %1624 = vadd.xlane.f32.xlu0 %v1623
  %v1625 = vpop.xlane.xlu0 %1624
  %v1626 = vsel %vm107, %v1614, 0.0
  %1627 = vadd.xlane.f32.xlu0 %v1626
  %v1628 = vpop.xlane.xlu0 %1627
  %v1629 = vsel %vm107, %v1615, 0.0
  %1630 = vadd.xlane.f32.xlu0 %v1629
  %v1631 = vpop.xlane.xlu0 %1630
  %v1632 = vsel %vm107, %v1616, 0.0
  %1633 = vadd.xlane.f32.xlu0 %v1632
  %v1634 = vpop.xlane.xlu0 %1633
  %v1635 = vmul.f32 %v1619, %v1598
  %v1636 = vmul.f32 %v1622, %v1598
  %v1637 = vmul.f32 %v1625, %v1598
  %v1638 = vmul.f32 %v1628, %v1598
  %v1639 = vmul.f32 %v1631, %v1598
  %v1640 = vmul.f32 %v1634, %v1598
  %v1641 = vadd.f32 %v1635, 1e-05
  %v1642 = vadd.f32 %v1636, 1e-05
  %v1643 = vadd.f32 %v1637, 1e-05
  %v1644 = vadd.f32 %v1638, 1e-05
  %v1645 = vadd.f32 %v1639, 1e-05
  %v1646 = vadd.f32 %v1640, 1e-05
  %v1647 = vrsqrt.pop %v1641
  %v1648 = vrsqrt.pop %v1642
  %v1649 = vrsqrt.pop %v1643
  %v1650 = vrsqrt.pop %v1644
  %v1651 = vrsqrt.pop %v1645
  %v1652 = vrsqrt.pop %v1646
  %v1653 = vmul.f32 %v1605, %v1647
  %v1654 = vmul.f32 %v1606, %v1648
  %v1655 = vmul.f32 %v1607, %v1649
  %v1656 = vmul.f32 %v1608, %v1650
  %v1657 = vmul.f32 %v1609, %v1651
  %v1658 = vmul.f32 %v1610, %v1652
  %v1660 = vsel %vm107, %v1653, 0
  %v1663 = vsel %vm107, %v1654, 0
  %v1666 = vsel %vm107, %v1655, 0
  %v1669 = vsel %vm107, %v1656, 0
  %v1672 = vsel %vm107, %v1657, 0
  %v1675 = vsel %vm107, %v1658, 0
  %1677 = vmatprep.subr.mxu0 0.0
  %1678 = vmatpush1.msra.mxu0 %v83
  %1679 = vmatprep.subr.mxu0 0.0
  %1680 = vmatpush1.msra.mxu0 %v84
  %1681 = vmatprep.subr.mxu0 0.0
  %1682 = vmatpush1.msra.mxu0 %v85
  %1683 = vmatprep.subr.mxu0 0.0
  %1684 = vmatpush1.msra.mxu0 %v86
  %1685 = vmatprep.subr.mxu0 0.0
  %1686 = vmatpush1.msra.mxu0 %v87
  %1687 = vmatprep.subr.mxu0 0.0
  %1688 = vmatpush1.msra.mxu0 %v88
  %1689 = vmatprep.subr.mxu0 0.0
  %1690 = vmatpush1.msra.mxu0 %v89
  %1691 = vmatprep.subr.mxu0 0.0
  %1692 = vmatpush1.msra.mxu0 %v90
  %1693 = vmatprep.subr.mxu0 0.0
  %1694 = vmatpush1.msra.mxu0 0.0
  %1695 = vmatprep.subr.mxu0 0.0
  %1696 = vmatpush1.msra.mxu0 0.0
  %1697 = vmatprep.subr.mxu0 0.0
  %1698 = vmatpush1.msra.mxu0 0.0
  %1699 = vmatprep.subr.mxu0 0.0
  %1700 = vmatpush1.msra.mxu0 0.0
  %1701 = vmatprep.subr.mxu0 0.0
  %1702 = vmatpush1.msra.mxu0 0.0
  %1703 = vmatprep.subr.mxu0 0.0
  %1704 = vmatpush1.msra.mxu0 0.0
  %1705 = vmatprep.subr.mxu0 0.0
  %1706 = vmatpush1.msra.mxu0 0.0
  %1707 = vmatprep.subr.mxu0 0.0
  %1708 = vmatpush1.msra.mxu0 0.0
  %1709 = vmatprep.subr.mxu0 0.0
  %1710 = vmatpush1.msra.mxu0 0.0
  %1711 = vmatprep.subr.mxu0 0.0
  %1712 = vmatpush1.msra.mxu0 0.0
  %1713 = vmatprep.subr.mxu0 0.0
  %1714 = vmatpush1.msra.mxu0 0.0
  %1715 = vmatprep.subr.mxu0 0.0
  %1716 = vmatpush1.msra.mxu0 0.0
  %1717 = vmatprep.subr.mxu0 0.0
  %1718 = vmatpush1.msra.mxu0 0.0
  %1719 = vmatprep.subr.mxu0 0.0
  %1720 = vmatpush1.msra.mxu0 0.0
  %1721 = vmatprep.subr.mxu0 0.0
  %1722 = vmatpush1.msra.mxu0 0.0
  %1723 = vmatprep.subr.mxu0 0.0
  %1724 = vmatpush1.msra.mxu0 0.0
  %1725 = vmatprep.subr.mxu0 0.0
  %1726 = vmatpush1.msra.mxu0 0.0
  %1727 = vmatprep.subr.mxu0 0.0
  %1728 = vmatpush1.msra.mxu0 0.0
  %1729 = vmatprep.subr.mxu0 0.0
  %1730 = vmatpush1.msra.mxu0 0.0
  %1731 = vmatprep.subr.mxu0 0.0
  %1732 = vmatpush1.msra.mxu0 0.0
  %1733 = vmatprep.subr.mxu0 0.0
  %1734 = vmatpush1.msra.mxu0 0.0
  %1735 = vmatprep.subr.mxu0 0.0
  %1736 = vmatpush1.msra.mxu0 0.0
  %1737 = vmatprep.subr.mxu0 0.0
  %1738 = vmatpush1.msra.mxu0 0.0
  %1739 = vmatprep.subr.mxu0 0.0
  %1740 = vmatpush1.msra.mxu0 0.0
  %1741 = vmatprep.mubr.f32.mxu0 0.0
  %1742 = vmatmul.mubr.f32.gmra.mrb[0].mxu0 %v1660
  %v1743 = vpop.f32.mrb[0].mxu0
  %v1744 = vadd.f32 0.0, %v1743
  %v1745 = vpop.f32.mrb[0].mxu0
  %1746 = vmatprep.mubr.f32.mxu0 0.0
  %1747 = vmatmul.mubr.f32.gmra.mrb[0].mxu0 %v1663
  %v1748 = vpop.f32.mrb[0].mxu0
  %v1749 = vadd.f32 0.0, %v1748
  %v1750 = vpop.f32.mrb[0].mxu0
  %1751 = vmatprep.mubr.f32.mxu0 0.0
  %1752 = vmatmul.mubr.f32.gmra.mrb[0].mxu0 %v1666
  %v1753 = vpop.f32.mrb[0].mxu0
  %v1754 = vadd.f32 0.0, %v1753
  %v1755 = vpop.f32.mrb[0].mxu0
  %1756 = vmatprep.mubr.f32.mxu0 0.0
  %1757 = vmatmul.mubr.f32.gmra.mrb[0].mxu0 %v1669
  %v1758 = vpop.f32.mrb[0].mxu0
  %v1759 = vadd.f32 0.0, %v1758
  %v1760 = vpop.f32.mrb[0].mxu0
  %1761 = vmatprep.mubr.f32.mxu0 0.0
  %1762 = vmatmul.mubr.f32.gmra.mrb[0].mxu0 %v1672
  %v1763 = vpop.f32.mrb[0].mxu0
  %v1764 = vadd.f32 0.0, %v1763
  %v1765 = vpop.f32.mrb[0].mxu0
  %1766 = vmatprep.mubr.f32.mxu0 0.0
  %1767 = vmatmul.mubr.f32.gmra.mrb[0].mxu0 %v1675
  %v1768 = vpop.f32.mrb[0].mxu0
  %v1769 = vadd.f32 0.0, %v1768
  %v1770 = vpop.f32.mrb[0].mxu0
  %1771 = vdwg.mxu0
  %v1772 = vmax.f32 %v1744, 0.0
  %v1773 = vmax.f32 %v1749, 0.0
  %v1774 = vmax.f32 %v1754, 0.0
  %v1775 = vmax.f32 %v1759, 0.0
  %v1776 = vmax.f32 %v1764, 0.0
  %v1777 = vmax.f32 %v1769, 0.0
  %1778 = vmatprep.subr.mxu0 0.0
  %1779 = vmatpush1.msra.mxu0 %v91
  %1780 = vmatprep.subr.mxu0 0.0
  %1781 = vmatpush1.msra.mxu0 %v92
  %1782 = vmatprep.subr.mxu0 0.0
  %1783 = vmatpush1.msra.mxu0 %v93
  %1784 = vmatprep.subr.mxu0 0.0
  %1785 = vmatpush1.msra.mxu0 %v94
  %1786 = vmatprep.subr.mxu0 0.0
  %1787 = vmatpush1.msra.mxu0 %v95
  %1788 = vmatprep.subr.mxu0 0.0
  %1789 = vmatpush1.msra.mxu0 %v96
  %1790 = vmatprep.subr.mxu0 0.0
  %1791 = vmatpush1.msra.mxu0 %v97
  %1792 = vmatprep.subr.mxu0 0.0
  %1793 = vmatpush1.msra.mxu0 %v98
  %1794 = vmatprep.subr.mxu0 0.0
  %1795 = vmatpush1.msra.mxu0 %v99
  %1796 = vmatprep.subr.mxu0 0.0
  %1797 = vmatpush1.msra.mxu0 %v100
  %1798 = vmatprep.subr.mxu0 0.0
  %1799 = vmatpush1.msra.mxu0 %v101
  %1800 = vmatprep.subr.mxu0 0.0
  %1801 = vmatpush1.msra.mxu0 %v102
  %1802 = vmatprep.subr.mxu0 0.0
  %1803 = vmatpush1.msra.mxu0 %v103
  %1804 = vmatprep.subr.mxu0 0.0
  %1805 = vmatpush1.msra.mxu0 %v104
  %1806 = vmatprep.subr.mxu0 0.0
  %1807 = vmatpush1.msra.mxu0 %v105
  %1808 = vmatprep.subr.mxu0 0.0
  %1809 = vmatpush1.msra.mxu0 %v106
  %1810 = vmatprep.subr.mxu0 0.0
  %1811 = vmatpush1.msra.mxu0 0.0
  %1812 = vmatprep.subr.mxu0 0.0
  %1813 = vmatpush1.msra.mxu0 0.0
  %1814 = vmatprep.subr.mxu0 0.0
  %1815 = vmatpush1.msra.mxu0 0.0
  %1816 = vmatprep.subr.mxu0 0.0
  %1817 = vmatpush1.msra.mxu0 0.0
  %1818 = vmatprep.subr.mxu0 0.0
  %1819 = vmatpush1.msra.mxu0 0.0
  %1820 = vmatprep.subr.mxu0 0.0
  %1821 = vmatpush1.msra.mxu0 0.0
  %1822 = vmatprep.subr.mxu0 0.0
  %1823 = vmatpush1.msra.mxu0 0.0
  %1824 = vmatprep.subr.mxu0 0.0
  %1825 = vmatpush1.msra.mxu0 0.0
  %1826 = vmatprep.subr.mxu0 0.0
  %1827 = vmatpush1.msra.mxu0 0.0
  %1828 = vmatprep.subr.mxu0 0.0
  %1829 = vmatpush1.msra.mxu0 0.0
  %1830 = vmatprep.subr.mxu0 0.0
  %1831 = vmatpush1.msra.mxu0 0.0
  %1832 = vmatprep.subr.mxu0 0.0
  %1833 = vmatpush1.msra.mxu0 0.0
  %1834 = vmatprep.subr.mxu0 0.0
  %1835 = vmatpush1.msra.mxu0 0.0
  %1836 = vmatprep.subr.mxu0 0.0
  %1837 = vmatpush1.msra.mxu0 0.0
  %1838 = vmatprep.subr.mxu0 0.0
  %1839 = vmatpush1.msra.mxu0 0.0
  %1840 = vmatprep.subr.mxu0 0.0
  %1841 = vmatpush1.msra.mxu0 0.0
  %1842 = vmatprep.mubr.f32.mxu0 0.0
  %1843 = vmatmul.mubr.f32.gmra.mrb[0].mxu0 %v1772
  %v1844 = vpop.f32.mrb[0].mxu0
  %v1845 = vadd.f32 %v1653, %v1844
  %v1846 = vpop.f32.mrb[0].mxu0
  %1847 = vmatprep.mubr.f32.mxu0 0.0
  %1848 = vmatmul.mubr.f32.gmra.mrb[0].mxu0 %v1773
  %v1849 = vpop.f32.mrb[0].mxu0
  %v1850 = vadd.f32 %v1654, %v1849
  %v1851 = vpop.f32.mrb[0].mxu0
  %1852 = vmatprep.mubr.f32.mxu0 0.0
  %1853 = vmatmul.mubr.f32.gmra.mrb[0].mxu0 %v1774
  %v1854 = vpop.f32.mrb[0].mxu0
  %v1855 = vadd.f32 %v1655, %v1854
  %v1856 = vpop.f32.mrb[0].mxu0
  %1857 = vmatprep.mubr.f32.mxu0 0.0
  %1858 = vmatmul.mubr.f32.gmra.mrb[0].mxu0 %v1775
  %v1859 = vpop.f32.mrb[0].mxu0
  %v1860 = vadd.f32 %v1656, %v1859
  %v1861 = vpop.f32.mrb[0].mxu0
  %1862 = vmatprep.mubr.f32.mxu0 0.0
  %1863 = vmatmul.mubr.f32.gmra.mrb[0].mxu0 %v1776
  %v1864 = vpop.f32.mrb[0].mxu0
  %v1865 = vadd.f32 %v1657, %v1864
  %v1866 = vpop.f32.mrb[0].mxu0
  %1867 = vmatprep.mubr.f32.mxu0 0.0
  %1868 = vmatmul.mubr.f32.gmra.mrb[0].mxu0 %v1777
  %v1869 = vpop.f32.mrb[0].mxu0
  %v1870 = vadd.f32 %v1658, %v1869
  %v1871 = vpop.f32.mrb[0].mxu0
  %1872 = vdwg.mxu0
  %v1873 = vsel %vm107, %v1845, 0.0
  %1874 = vadd.xlane.f32.xlu0 %v1873
  %v1875 = vpop.xlane.xlu0 %1874
  %v1876 = vsel %vm107, %v1850, 0.0
  %1877 = vadd.xlane.f32.xlu0 %v1876
  %v1878 = vpop.xlane.xlu0 %1877
  %v1879 = vsel %vm107, %v1855, 0.0
  %1880 = vadd.xlane.f32.xlu0 %v1879
  %v1881 = vpop.xlane.xlu0 %1880
  %v1882 = vsel %vm107, %v1860, 0.0
  %1883 = vadd.xlane.f32.xlu0 %v1882
  %v1884 = vpop.xlane.xlu0 %1883
  %v1885 = vsel %vm107, %v1865, 0.0
  %1886 = vadd.xlane.f32.xlu0 %v1885
  %v1887 = vpop.xlane.xlu0 %1886
  %v1888 = vsel %vm107, %v1870, 0.0
  %1889 = vadd.xlane.f32.xlu0 %v1888
  %v1890 = vpop.xlane.xlu0 %1889
  %v1891 = vmul.f32 %v1875, %v1598
  %v1892 = vmul.f32 %v1878, %v1598
  %v1893 = vmul.f32 %v1881, %v1598
  %v1894 = vmul.f32 %v1884, %v1598
  %v1895 = vmul.f32 %v1887, %v1598
  %v1896 = vmul.f32 %v1890, %v1598
  %v1897 = vsub.f32 %v1845, %v1891
  %v1898 = vsub.f32 %v1850, %v1892
  %v1899 = vsub.f32 %v1855, %v1893
  %v1900 = vsub.f32 %v1860, %v1894
  %v1901 = vsub.f32 %v1865, %v1895
  %v1902 = vsub.f32 %v1870, %v1896
  %v1903 = vmul.f32 %v1897, %v1897
  %v1904 = vmul.f32 %v1898, %v1898
  %v1905 = vmul.f32 %v1899, %v1899
  %v1906 = vmul.f32 %v1900, %v1900
  %v1907 = vmul.f32 %v1901, %v1901
  %v1908 = vmul.f32 %v1902, %v1902
  %v1909 = vsel %vm107, %v1903, 0.0
  %1910 = vadd.xlane.f32.xlu0 %v1909
  %v1911 = vpop.xlane.xlu0 %1910
  %v1912 = vsel %vm107, %v1904, 0.0
  %1913 = vadd.xlane.f32.xlu0 %v1912
  %v1914 = vpop.xlane.xlu0 %1913
  %v1915 = vsel %vm107, %v1905, 0.0
  %1916 = vadd.xlane.f32.xlu0 %v1915
  %v1917 = vpop.xlane.xlu0 %1916
  %v1918 = vsel %vm107, %v1906, 0.0
  %1919 = vadd.xlane.f32.xlu0 %v1918
  %v1920 = vpop.xlane.xlu0 %1919
  %v1921 = vsel %vm107, %v1907, 0.0
  %1922 = vadd.xlane.f32.xlu0 %v1921
  %v1923 = vpop.xlane.xlu0 %1922
  %v1924 = vsel %vm107, %v1908, 0.0
  %1925 = vadd.xlane.f32.xlu0 %v1924
  %v1926 = vpop.xlane.xlu0 %1925
  %v1927 = vmul.f32 %v1911, %v1598
  %v1928 = vmul.f32 %v1914, %v1598
  %v1929 = vmul.f32 %v1917, %v1598
  %v1930 = vmul.f32 %v1920, %v1598
  %v1931 = vmul.f32 %v1923, %v1598
  %v1932 = vmul.f32 %v1926, %v1598
  %v1933 = vadd.f32 %v1927, 1e-05
  %v1934 = vadd.f32 %v1928, 1e-05
  %v1935 = vadd.f32 %v1929, 1e-05
  %v1936 = vadd.f32 %v1930, 1e-05
  %v1937 = vadd.f32 %v1931, 1e-05
  %v1938 = vadd.f32 %v1932, 1e-05
  %v1939 = vrsqrt.pop %v1933
  %v1940 = vrsqrt.pop %v1934
  %v1941 = vrsqrt.pop %v1935
  %v1942 = vrsqrt.pop %v1936
  %v1943 = vrsqrt.pop %v1937
  %v1944 = vrsqrt.pop %v1938
  %v1945 = vmul.f32 %v1897, %v1939
  %v1946 = vmul.f32 %v1898, %v1940
  %v1947 = vmul.f32 %v1899, %v1941
  %v1948 = vmul.f32 %v1900, %v1942
  %v1949 = vmul.f32 %v1901, %v1943
  %v1950 = vmul.f32 %v1902, %v1944
  %1951 = vst.msk [vmem:[%s7] sm:$0xff] %vm107, %v1945
  %1952 = vst.msk [vmem:[%s7 + $0x8] sm:$0xff] %vm107, %v1946
  %1953 = vst.msk [vmem:[%s7 + $0x10] sm:$0xff] %vm107, %v1947
  %1954 = vst.msk [vmem:[%s7 + $0x18] sm:$0xff] %vm107, %v1948
  %1955 = vst.msk [vmem:[%s7 + $0x20] sm:$0xff] %vm107, %v1949
  %1956 = vst.msk [vmem:[%s7 + $0x28] sm:$0xff] %vm107, %v1950
  // Predicated region
  $region34: #{decoder_forward.1} parent=0 // pred_check
    _
  $region35: #{decoder_forward.1} parent=0 // pred_check_branch
    %1958 = sbr.rel (0) target = $region37
  $region36: #{decoder_forward.1} parent=0 // pred_region
    _
  $region37: #{decoder_forward.1} parent=0 // pred_fallthru
    _
  // Predicated region
  $region38: #{decoder_forward.1} parent=0 // pred_check
    _
  $region39: #{decoder_forward.1} parent=0 // pred_check_branch
    %1960 = sbr.rel (0) target = $region41
  $region40: #{decoder_forward.1} parent=0 // pred_region
    _
  $region41: #{decoder_forward.1} parent=0 // pred_fallthru
    _
  // Predicated region
  $region42: #{decoder_forward.1} parent=0 // pred_check
    _
  $region43: #{decoder_forward.1} parent=0 // pred_check_branch
    %1962 = sbr.rel (0) target = $region45
  $region44: #{decoder_forward.1} parent=0 // pred_region
    _
  $region45: #{decoder_forward.1} parent=0 // pred_fallthru
    _
  // Predicated region
  $region46: #{decoder_forward.1} parent=0 // pred_check
    _
  $region47: #{decoder_forward.1} parent=0 // pred_check_branch
    %1964 = sbr.rel (0) target = $region49
  $region48: #{decoder_forward.1} parent=0 // pred_region
    _
  $region49: #{decoder_forward.1} parent=0 // pred_fallthru
    _

</llo_original>
